<compile_context>
chip_gen: v7x
topology: tpu7x:2x2x1
jax: 0.10.0
libtpu: 0.0.40
codegen_flags: <defaults>
</compile_context>

<pallas_src>
import functools
import math

import jax
import jax.numpy as jnp
from jax.experimental import pallas as pl
from jax.experimental.pallas import tpu as pltpu


_PER_TAP_MIN_CIN = 128  # Cin >= this -> per-tap MXU accumulation (no im2col)


@functools.lru_cache(maxsize=None)
def _vmem_limit_bytes():
    # Generation-aware scoped-VMEM limit: ~3/4 of physical VMEM, capped at
    # 100 MiB (=> ~48 MiB on v7x, ~96 MiB on v5e/v6e).
    cap = 64 * 1024 * 1024
    try:
        cap = int(getattr(pltpu.get_tpu_info(), "vmem_capacity_bytes", cap))
    except Exception:  # query unavailable -> conservative default
        pass
    return min(100 * 1024 * 1024, (cap * 3) // 4)


def _compiler_params():
    return pltpu.CompilerParams(
        dimension_semantics=("parallel",),
        vmem_limit_bytes=_vmem_limit_bytes(),
    )


# ----------------------------------------------------------------------------
# In-kernel helpers (pure jnp, traced inside the Pallas kernels).
# ----------------------------------------------------------------------------
def _prelu(v, alpha):
    # alpha: (1, C), broadcasts against (..., C).  PReLU(0) == 0.
    return jnp.where(v > 0, v, v * alpha)


def _zero_pad_hw(v, pad, extra_h=0, extra_w=0):
    # (H, W, C) -> (H + 2*pad + extra_h, W + 2*pad + extra_w, C), zero border.
    # TODO(synk): replace with a persistent padded VMEM scratch to avoid the
    # two full-tensor concats on the high-resolution small-C layers.
    H, W, C = v.shape
    dt = v.dtype
    v = jnp.concatenate(
        [jnp.zeros((H, pad, C), dt), v, jnp.zeros((H, pad + extra_w, C), dt)],
        axis=1)
    Wp = v.shape[1]
    v = jnp.concatenate(
        [jnp.zeros((pad, Wp, C), dt), v, jnp.zeros((pad + extra_h, Wp, C), dt)],
        axis=0)
    return v


def _conv2d(xp, w, b, *, K, stride, Hout, Wout):
    """xp: (Hp, Wp, Cin) zero-padded bf16 input; w: (K*K*Cin, Cout) bf16;
    b: (1, Cout) f32.  Returns (Hout*Wout, Cout) f32 (MXU, f32 accumulate).

    Weight layout: w[(dy*K + dx)*Cin + cin, cout]
    (== torch weight.permute(2, 3, 1, 0).reshape(K*K*Cin, Cout)).
    """
    Hp, Wp, Cin = xp.shape

    if stride == 1:
        def tap(dy, dx):
            return xp[dy:dy + Hout, dx:dx + Wout]
    else:
        # Pre-split into stride*stride parity planes once (single relayout),
        # then every tap is a contiguous static slice of a plane.
        Hs, Ws = Hp // stride, Wp // stride
        xr = xp[:Hs * stride, :Ws * stride].reshape(Hs, stride, Ws, stride, Cin)
        planes = [[xr[:, py, :, px] for px in range(stride)]
                  for py in range(stride)]

        def tap(dy, dx):
            p = planes[dy % stride][dx % stride]
            return p[dy // stride:dy // stride + Hout,
                     dx // stride:dx // stride + Wout]

    if Cin >= _PER_TAP_MIN_CIN:
        # Per-tap accumulation: K*K matmuls with reduction depth Cin (>= MXU
        # systolic depth), no (HW, K*K*Cin) patch buffer, no lane concat.
        acc = None
        for dy in range(K):
            for dx in range(K):
                t = tap(dy, dx).reshape(Hout * Wout, Cin)
                wt = w[(dy * K + dx) * Cin:(dy * K + dx + 1) * Cin, :]
                y = jnp.dot(t, wt, preferred_element_type=jnp.float32)
                acc = y if acc is None else acc + y
        return acc + b

    # Small Cin: single im2col matmul (K = K*K*Cin).
    taps = [tap(dy, dx) for dy in range(K) for dx in range(K)]
    patches = jnp.concatenate(taps, axis=-1).reshape(Hout * Wout, K * K * Cin)
    return jnp.dot(patches, w, preferred_element_type=jnp.float32) + b


def _bilinear_up2(x):
    # (H, W, C) -> (2H, 2W, C); matches torch Upsample(scale=2, bilinear,
    # align_corners=False): out[2k] = .25*x[k-1] + .75*x[k] (edge clamped),
    #                       out[2k+1] = .75*x[k] + .25*x[k+1].
    H, W, C = x.shape
    xm = x if H == 1 else jnp.concatenate([x[:1], x[:-1]], axis=0)
    xp_ = x if H == 1 else jnp.concatenate([x[1:], x[-1:]], axis=0)
    row_e = 0.25 * xm + 0.75 * x
    row_o = 0.75 * x + 0.25 * xp_
    rows = jnp.stack([row_e, row_o], axis=1).reshape(2 * H, W, C)
    cm = rows if W == 1 else jnp.concatenate([rows[:, :1], rows[:, :-1]], axis=1)
    cn = rows if W == 1 else jnp.concatenate([rows[:, 1:], rows[:, -1:]], axis=1)
    col_e = 0.25 * cm + 0.75 * rows
    col_o = 0.75 * rows + 0.25 * cn
    return jnp.stack([col_e, col_o], axis=2).reshape(2 * H, 2 * W, C)


# ----------------------------------------------------------------------------
# Kernel builders (lru_cached so identical block configs reuse one compiled
# kernel).
# ----------------------------------------------------------------------------
@functools.lru_cache(maxsize=None)
def _build_patch_matmul(B, Hout, Wout, Kdim, Cout, dtype_name):
    """Bias-added matmul over wrapper-side im2col patches (netImage stem)."""
    dtype = jnp.dtype(dtype_name)

    def kernel(p_ref, w_ref, b_ref, o_ref):
        x = p_ref[0].reshape(Hout * Wout, Kdim).astype(jnp.bfloat16)
        y = jnp.dot(x, w_ref[...], preferred_element_type=jnp.float32) + b_ref[...]
        o_ref[0] = y.reshape(Hout, Wout, Cout).astype(o_ref.dtype)

    return pl.pallas_call(
        kernel,
        out_shape=jax.ShapeDtypeStruct((B, Hout, Wout, Cout), dtype),
        grid=(B,),
        in_specs=[
            pl.BlockSpec((1, Hout, Wout, Kdim), lambda b: (b, 0, 0, 0)),
            pl.BlockSpec((Kdim, Cout), lambda b: (0, 0)),
            pl.BlockSpec((1, Cout), lambda b: (0, 0)),
        ],
        out_specs=pl.BlockSpec((1, Hout, Wout, Cout), lambda b: (b, 0, 0, 0)),
        compiler_params=_compiler_params(),
    )


@functools.lru_cache(maxsize=None)
def _build_single_conv(B, H, W, Cin, Cout, K, stride, dtype_name):
    """Plain conv (used for netSemantics, Cin=512 -> per-tap path)."""
    pad = K // 2
    Hout = (H + 2 * pad - K) // stride + 1
    Wout = (W + 2 * pad - K) // stride + 1
    extra_h = max(0, (K - 1) + stride * Hout - (H + 2 * pad))
    extra_w = max(0, (K - 1) + stride * Wout - (W + 2 * pad))
    dtype = jnp.dtype(dtype_name)

    def kernel(x_ref, w_ref, b_ref, o_ref):
        xp = _zero_pad_hw(x_ref[0].astype(jnp.bfloat16), pad, extra_h, extra_w)
        y = _conv2d(xp, w_ref[...], b_ref[...],
                    K=K, stride=stride, Hout=Hout, Wout=Wout)
        o_ref[0] = y.reshape(Hout, Wout, Cout).astype(o_ref.dtype)

    return pl.pallas_call(
        kernel,
        out_shape=jax.ShapeDtypeStruct((B, Hout, Wout, Cout), dtype),
        grid=(B,),
        in_specs=[
            pl.BlockSpec((1, H, W, Cin), lambda b: (b, 0, 0, 0)),
            pl.BlockSpec((K * K * Cin, Cout), lambda b: (0, 0)),
            pl.BlockSpec((1, Cout), lambda b: (0, 0)),
        ],
        out_specs=pl.BlockSpec((1, Hout, Wout, Cout), lambda b: (b, 0, 0, 0)),
        compiler_params=_compiler_params(),
    )


@functools.lru_cache(maxsize=None)
def _build_double_conv(B, H, W, C0, C1, C2, stride1, prelu1, residual,
                       final_relu, has_addend, dtype_name):
    """[PReLU?] -> conv3x3(stride1) -> PReLU -> conv3x3(s1)
       [+ identity / 1x1-proj residual] [+ ReLU] [+ fused external addend].

    When C2 == 1 (disparity head) the channel dim is squeezed out of the
    output so stores are lane-dense along W instead of 1-wide masked stores.
    """
    if residual == "identity":
        assert stride1 == 1 and C0 == C2, (stride1, C0, C2)
    if residual == "proj":
        assert stride1 == 1, stride1
    pad = 1
    H1 = (H + 2 * pad - 3) // stride1 + 1
    W1 = (W + 2 * pad - 3) // stride1 + 1
    extra_h = max(0, 2 + stride1 * H1 - (H + 2 * pad))
    extra_w = max(0, 2 + stride1 * W1 - (W + 2 * pad))
    dtype = jnp.dtype(dtype_name)
    squeeze_out = (C2 == 1) and not has_addend

    def kernel(*refs):
        it = iter(refs)
        x_ref = next(it)
        a1_ref = next(it) if prelu1 else None
        w1_ref, b1_ref, a2_ref, w2_ref, b2_ref = (next(it) for _ in range(5))
        ws_ref = bs_ref = None
        if residual == "proj":
            ws_ref, bs_ref = next(it), next(it)
        add_ref = next(it) if has_addend else None
        o_ref = next(it)

        x = x_ref[0]                                     # (H, W, C0) f32
        v = _prelu(x, a1_ref[...]) if prelu1 else x
        xp = _zero_pad_hw(v.astype(jnp.bfloat16), pad, extra_h, extra_w)
        y1 = _conv2d(xp, w1_ref[...], b1_ref[...],
                     K=3, stride=stride1, Hout=H1, Wout=W1)     # (H1*W1, C1) f32
        y1 = _prelu(y1, a2_ref[...]).astype(jnp.bfloat16).reshape(H1, W1, C1)
        y2 = _conv2d(_zero_pad_hw(y1, pad), w2_ref[...], b2_ref[...],
                     K=3, stride=1, Hout=H1, Wout=W1)           # (H1*W1, C2) f32

        if residual == "identity":          # Basic: netMain(x) + x
            y2 = y2 + x.reshape(H * W, C0)
        elif residual == "proj":            # Basic: netMain(x) + Conv1x1(x)
            y2 = y2 + (jnp.dot(x.reshape(H * W, C0).astype(jnp.bfloat16),
                               ws_ref[...],
                               preferred_element_type=jnp.float32) + bs_ref[...])
        if final_relu:                      # threshold(., 0, 0)
            y2 = jnp.maximum(y2, 0.0)

        if squeeze_out:                     # lane-dense (H1, W1) store
            o_ref[0] = y2.reshape(H1, W1).astype(o_ref.dtype)
        else:
            out = y2.reshape(H1, W1, C2)
            if has_addend:                  # fused "+=" skip connection
                out = out + add_ref[0]
            o_ref[0] = out.astype(o_ref.dtype)

    in_specs = [pl.BlockSpec((1, H, W, C0), lambda b: (b, 0, 0, 0))]
    if prelu1:
        in_specs.append(pl.BlockSpec((1, C0), lambda b: (0, 0)))
    in_specs += [
        pl.BlockSpec((9 * C0, C1), lambda b: (0, 0)),
        pl.BlockSpec((1, C1), lambda b: (0, 0)),
        pl.BlockSpec((1, C1), lambda b: (0, 0)),
        pl.BlockSpec((9 * C1, C2), lambda b: (0, 0)),
        pl.BlockSpec((1, C2), lambda b: (0, 0)),
    ]
    if residual == "proj":
        in_specs += [pl.BlockSpec((C0, C2), lambda b: (0, 0)),
                     pl.BlockSpec((1, C2), lambda b: (0, 0))]
    if has_addend:
        in_specs.append(pl.BlockSpec((1, H1, W1, C2), lambda b: (b, 0, 0, 0)))

    if squeeze_out:
        out_shape = jax.ShapeDtypeStruct((B, H1, W1), dtype)
        out_specs = pl.BlockSpec((1, H1, W1), lambda b: (b, 0, 0))
    else:
        out_shape = jax.ShapeDtypeStruct((B, H1, W1, C2), dtype)
        out_specs = pl.BlockSpec((1, H1, W1, C2), lambda b: (b, 0, 0, 0))

    return pl.pallas_call(
        kernel, out_shape=out_shape, grid=(B,),
        in_specs=in_specs, out_specs=out_specs,
        compiler_params=_compiler_params(),
    )


@functools.lru_cache(maxsize=None)
def _build_upsample_block(B, H, W, C0, C1, C2, Ht, Wt, has_addend, dtype_name):
    """bilinear2x -> PReLU -> conv3x3 -> PReLU -> conv3x3, cropped to (Ht, Wt)
    (torch's pad=-1) with an optional fused skip-add; all in one kernel."""
    Hu, Wu = 2 * H, 2 * W
    dtype = jnp.dtype(dtype_name)

    def kernel(*refs):
        it = iter(refs)
        x_ref, a1_ref, w1_ref, b1_ref, a2_ref, w2_ref, b2_ref = (
            next(it) for _ in range(7))
        add_ref = next(it) if has_addend else None
        o_ref = next(it)

        up = _bilinear_up2(x_ref[0])                       # (Hu, Wu, C0) in VMEM
        v = _prelu(up, a1_ref[...]).astype(jnp.bfloat16)
        y1 = _conv2d(_zero_pad_hw(v, 1), w1_ref[...], b1_ref[...],
                     K=3, stride=1, Hout=Hu, Wout=Wu)
        y1 = _prelu(y1, a2_ref[...]).astype(jnp.bfloat16).reshape(Hu, Wu, C1)
        y2 = _conv2d(_zero_pad_hw(y1, 1), w2_ref[...], b2_ref[...],
                     K=3, stride=1, Hout=Hu, Wout=Wu)
        out = y2.reshape(Hu, Wu, C2)[:Ht, :Wt]
        if has_addend:
            out = out + add_ref[0]
        o_ref[0] = out.astype(o_ref.dtype)

    in_specs = [
        pl.BlockSpec((1, H, W, C0), lambda b: (b, 0, 0, 0)),
        pl.BlockSpec((1, C0), lambda b: (0, 0)),
        pl.BlockSpec((9 * C0, C1), lambda b: (0, 0)),
        pl.BlockSpec((1, C1), lambda b: (0, 0)),
        pl.BlockSpec((1, C1), lambda b: (0, 0)),
        pl.BlockSpec((9 * C1, C2), lambda b: (0, 0)),
        pl.BlockSpec((1, C2), lambda b: (0, 0)),
    ]
    if has_addend:
        in_specs.append(pl.BlockSpec((1, Ht, Wt, C2), lambda b: (b, 0, 0, 0)))

    return pl.pallas_call(
        kernel,
        out_shape=jax.ShapeDtypeStruct((B, Ht, Wt, C2), dtype),
        grid=(B,),
        in_specs=in_specs,
        out_specs=pl.BlockSpec((1, Ht, Wt, C2), lambda b: (b, 0, 0, 0)),
        compiler_params=_compiler_params(),
    )


# ----------------------------------------------------------------------------
# Block wrappers (NHWC in / NHWC out).
# ----------------------------------------------------------------------------
def image_stem(x_img, p):
    # 7x7 stride-2 pad-3 conv (3 -> 32).  The im2col happens in the wrapper so
    # the kernel's last dim is 147 instead of a heavily lane-padded 3.
    B, H, W, Cin = x_img.shape
    K, stride, pad = 7, 2, 3
    Hout = (H + 2 * pad - K) // stride + 1
    Wout = (W + 2 * pad - K) // stride + 1
    xp = jnp.pad(x_img, ((0, 0), (pad, pad), (pad, pad), (0, 0)))
    taps = [xp[:, dy:dy + stride * Hout:stride, dx:dx + stride * Wout:stride, :]
            for dy in range(K) for dx in range(K)]
    patches = jnp.concatenate(taps, axis=-1)           # (B, Hout, Wout, K*K*Cin)
    Cout = p["w"].shape[-1]
    fn = _build_patch_matmul(B, Hout, Wout, K * K * Cin, Cout, x_img.dtype.name)
    return fn(patches, p["w"], p["b"])


def conv2d(x, p, *, K, stride):
    B, H, W, Cin = x.shape
    Cout = p["w"].shape[-1]
    fn = _build_single_conv(B, H, W, Cin, Cout, K, stride, x.dtype.name)
    return fn(x, p["w"], p["b"])


def basic_block(x, p):
    B, H, W, C0 = x.shape
    C1, C2 = p["w1"].shape[-1], p["w2"].shape[-1]
    fn = _build_double_conv(B, H, W, C0, C1, C2, 1, True, "identity", False,
                            False, x.dtype.name)
    return fn(x, p["a1"], p["w1"], p["b1"], p["a2"], p["w2"], p["b2"])


def downsample_block(x, p, addend=None):
    B, H, W, C0 = x.shape
    C1, C2 = p["w1"].shape[-1], p["w2"].shape[-1]
    fn = _build_double_conv(B, H, W, C0, C1, C2, 2, True, None, False,
                            addend is not None, x.dtype.name)
    args = [x, p["a1"], p["w1"], p["b1"], p["a2"], p["w2"], p["b2"]]
    if addend is not None:
        args.append(addend)
    return fn(*args)


def upsample_block(x, p, addend, out_hw):
    B, H, W, C0 = x.shape
    C1, C2 = p["w1"].shape[-1], p["w2"].shape[-1]
    Ht, Wt = out_hw
    fn = _build_upsample_block(B, H, W, C0, C1, C2, Ht, Wt,
                               addend is not None, x.dtype.name)
    args = [x, p["a1"], p["w1"], p["b1"], p["a2"], p["w2"], p["b2"]]
    if addend is not None:
        args.append(addend)
    return fn(*args)


def disparity_head(x, p):
    # Basic('conv-relu-conv', [32,32,1]) + 1x1 shortcut, then threshold (ReLU).
    B, H, W, C0 = x.shape
    C1, C2 = p["w1"].shape[-1], p["w2"].shape[-1]
    fn = _build_double_conv(B, H, W, C0, C1, C2, 1, False, "proj", True,
                            False, x.dtype.name)
    out = fn(x, p["w1"], p["b1"], p["a2"], p["w2"], p["b2"], p["ws"], p["bs"])
    return out[..., None] if C2 == 1 else out   # re-add squeezed channel dim


# ----------------------------------------------------------------------------
# Parameters.  Conv weights are stored as bf16 (K*K*Cin, Cout) with flat index
# (dy*K + dx)*Cin + cin  (== torch weight.permute(2, 3, 1, 0).reshape(...)).
# Biases / PReLU slopes are stored as (1, C) float32.
# ----------------------------------------------------------------------------
def _conv_params(key, K, Cin, Cout):
    kw, kb = jax.random.split(key)
    bound = 1.0 / math.sqrt(K * K * Cin)
    w = jax.random.uniform(kw, (K * K * Cin, Cout), jnp.float32, -bound, bound)
    b = jax.random.uniform(kb, (1, Cout), jnp.float32, -bound, bound)
    return w.astype(jnp.bfloat16), b


def _two_conv_params(key, ch):
    # Shared structure of Basic('relu-conv-relu-conv'), Downsample, Upsample.
    k1, k2 = jax.random.split(key)
    w1, b1 = _conv_params(k1, 3, ch[0], ch[1])
    w2, b2 = _conv_params(k2, 3, ch[1], ch[2])
    return dict(a1=jnp.full((1, ch[0]), 0.25, jnp.float32), w1=w1, b1=b1,
                a2=jnp.full((1, ch[1]), 0.25, jnp.float32), w2=w2, b2=b2)


def _head_params(key):
    k1, k2, k3 = jax.random.split(key, 3)
    w1, b1 = _conv_params(k1, 3, 32, 32)
    w2, b2 = _conv_params(k2, 3, 32, 1)
    ws, bs = _conv_params(k3, 1, 32, 1)
    return dict(w1=w1, b1=b1, a2=jnp.full((1, 32), 0.25, jnp.float32),
                w2=w2, b2=b2, ws=ws, bs=bs)


def init_disparity_params(key):
    params = {}
    keys = iter(jax.random.split(key, 64))
    w, b = _conv_params(next(keys), 7, 3, 32)
    params["netImage"] = dict(w=w, b=b)
    w, b = _conv_params(next(keys), 3, 512, 512)
    params["netSemantics"] = dict(w=w, b=b)

    feats = {0: 32, 1: 48, 2: 64, 3: 512, 4: 512, 5: 512}
    for r, f in feats.items():
        for c in range(3):
            params[f"{r}x{c} - {r}x{c + 1}"] = _two_conv_params(next(keys), (f, f, f))

    down_ch = {(0, 1): (32, 48, 48), (1, 2): (48, 64, 64),
               (2, 3): (64, 512, 512), (3, 4): (512, 512, 512),
               (4, 5): (512, 512, 512)}
    for col in (0, 1):
        for (r0, r1), ch in down_ch.items():
            params[f"{r0}x{col} - {r1}x{col}"] = _two_conv_params(next(keys), ch)

    up_ch = {(5, 4): (512, 512, 512), (4, 3): (512, 512, 512),
             (3, 2): (512, 64, 64), (2, 1): (64, 48, 48), (1, 0): (48, 32, 32)}
    for col in (2, 3):
        for (r0, r1), ch in up_ch.items():
            params[f"{r0}x{col} - {r1}x{col}"] = _two_conv_params(next(keys), ch)

    params["netDisparity"] = _head_params(next(keys))
    return params


# ----------------------------------------------------------------------------
# Disparity forward (same dataflow as the PyTorch module).
# ----------------------------------------------------------------------------
def disparity_forward(params, ten_image, ten_semantics):
    # NCHW -> NHWC once at the boundary; the whole pipeline stays in NHWC.
    x_img = jnp.transpose(ten_image, (0, 2, 3, 1))
    x_sem = jnp.transpose(ten_semantics, (0, 2, 3, 1))

    col = [None] * 6
    col[0] = image_stem(x_img, params["netImage"])
    col[1] = downsample_block(col[0], params["0x0 - 1x0"])
    col[2] = downsample_block(col[1], params["1x0 - 2x0"])
    sem = conv2d(x_sem, params["netSemantics"], K=3, stride=1)
    col[3] = downsample_block(col[2], params["2x0 - 3x0"], addend=sem)
    col[4] = downsample_block(col[3], params["3x0 - 4x0"])
    col[5] = downsample_block(col[4], params["4x0 - 5x0"])

    # Column 1: Basic blocks, with the downsample skip-add fused into the
    # downsample kernel.
    for r in range(6):
        col[r] = basic_block(col[r], params[f"{r}x0 - {r}x1"])
        if r != 0:
            col[r] = downsample_block(col[r - 1], params[f"{r - 1}x1 - {r}x1"],
                                      addend=col[r])

    # Columns 2 and 3: Basic blocks, with the (cropped) upsample skip-add
    # fused into the upsample kernel.
    for c in (2, 3):
        for r in range(5, -1, -1):
            col[r] = basic_block(col[r], params[f"{r}x{c - 1} - {r}x{c}"])
            if r != 5:
                col[r] = upsample_block(col[r + 1],
                                        params[f"{r + 1}x{c} - {r}x{c}"],
                                        addend=col[r],
                                        out_hw=(col[r].shape[1], col[r].shape[2]))

    out = disparity_head(col[0], params["netDisparity"])   # includes threshold
    return jnp.transpose(out, (0, 3, 1, 2))                 # back to NCHW


if __name__ == "__main__":
    key = jax.random.PRNGKey(0)
    k_img, k_sem, k_par = jax.random.split(key, 3)

    B, H, W = 2, 64, 64
    ten_image = jax.random.normal(k_img, (B, 3, H, W), jnp.float32)
    ten_semantics = jax.random.normal(k_sem, (B, 512, H // 16, W // 16),
                                      jnp.float32)
    params = init_disparity_params(k_par)

    out = disparity_forward(params, ten_image, ten_semantics)
    out = jax.block_until_ready(out)

    assert out.shape == (B, 1, H // 2, W // 2), out.shape
    assert out.dtype == jnp.float32
    assert bool(jnp.all(jnp.isfinite(out)))
    assert bool(jnp.all(out >= 0))  # final threshold(., 0, 0)
    print("KERNEL_OK")
</pallas_src>

<mosaic_0001>
module attributes {stable_mosaic.version = 11 : i64} {
  func.func @kernel(%arg0: i32, %arg1: memref<1x32x32x147xf32, #tpu.memory_space<vmem>>, %arg2: memref<147x32xbf16, #tpu.memory_space<vmem>>, %arg3: memref<1x32xf32, #tpu.memory_space<vmem>>, %arg4: memref<1x32x32x32xf32, #tpu.memory_space<vmem>>) attributes {dimension_semantics = [#tpu.dimension_semantics<parallel>], iteration_bounds = array<i64: 2>, scalar_prefetch = 0 : i64, scratch_operands = 0 : i64, tpu.core_type = #tpu.core_type<tc>, window_params = [{transform_indices = @transform_0, window_bounds = array<i64: 1, 32, 32, 147>}, {pipeline_mode = #tpu.pipeline_mode<synchronous>, transform_indices = @transform_1, window_bounds = array<i64: 147, 32>}, {pipeline_mode = #tpu.pipeline_mode<synchronous>, transform_indices = @transform_2, window_bounds = array<i64: 1, 32>}, {transform_indices = @transform_3, window_bounds = array<i64: 1, 32, 32, 32>}]} {
    %c0 = arith.constant 0 : index
    %c0_0 = arith.constant 0 : index
    %c0_1 = arith.constant 0 : index
    %c0_2 = arith.constant 0 : index
    %0 = vector.load %arg1[%c0, %c0_0, %c0_1, %c0_2] : memref<1x32x32x147xf32, #tpu.memory_space<vmem>>, vector<1x32x32x147xf32>
    %1 = vector.shape_cast %0 : vector<1x32x32x147xf32> to vector<32x32x147xf32>
    %2 = vector.shape_cast %1 : vector<32x32x147xf32> to vector<1024x147xf32>
    %3 = arith.truncf %2 : vector<1024x147xf32> to vector<1024x147xbf16>
    %c0_3 = arith.constant 0 : index
    %c0_4 = arith.constant 0 : index
    %4 = vector.load %arg2[%c0_3, %c0_4] : memref<147x32xbf16, #tpu.memory_space<vmem>>, vector<147x32xbf16>
    %cst = arith.constant dense<0.000000e+00> : vector<1024x32xf32>
    %5 = tpu.matmul %3, %4, %cst {dimension_numbers = #tpu.dot_dimension_numbers<[1], [0], [0], [1], [0, 0, 1, 1], [], []>} : vector<1024x147xbf16>, vector<147x32xbf16>, vector<1024x32xf32> -> vector<1024x32xf32>
    %c0_5 = arith.constant 0 : index
    %c0_6 = arith.constant 0 : index
    %6 = vector.load %arg3[%c0_5, %c0_6] : memref<1x32xf32, #tpu.memory_space<vmem>>, vector<1x32xf32>
    %7 = vector.broadcast %6 : vector<1x32xf32> to vector<1024x32xf32>
    %8 = arith.addf %5, %7 : vector<1024x32xf32>
    %9 = vector.shape_cast %8 : vector<1024x32xf32> to vector<32x32x32xf32>
    %c0_7 = arith.constant 0 : index
    %c0_8 = arith.constant 0 : index
    %c0_9 = arith.constant 0 : index
    %c0_10 = arith.constant 0 : index
    %10 = vector.load %arg4[%c0_7, %c0_8, %c0_9, %c0_10] : memref<1x32x32x32xf32, #tpu.memory_space<vmem>>, vector<1x32x32x32xf32>
    %11 = vector.shape_cast %10 : vector<1x32x32x32xf32> to vector<32x32x32xf32>
    %12 = vector.shape_cast %9 : vector<32x32x32xf32> to vector<1x32x32x32xf32>
    tpu.vector_store %arg4[%c0_7, %c0_8, %c0_9, %c0_10], %12 {strides = array<i32>} : memref<1x32x32x32xf32, #tpu.memory_space<vmem>>, vector<1x32x32x32xf32>,
    return
  }
  func.func @transform_0(%arg0: i32) -> (i32, i32, i32, i32) {
    %c0_i32 = arith.constant 0 : i32
    %c0_i32_0 = arith.constant 0 : i32
    %c0_i32_1 = arith.constant 0 : i32
    %c0_i32_2 = arith.constant 0 : i32
    return %arg0, %c0_i32, %c0_i32_0, %c0_i32_1 : i32, i32, i32, i32
  }
  func.func @transform_1(%arg0: i32) -> (i32, i32) {
    %c0_i32 = arith.constant 0 : i32
    %c0_i32_0 = arith.constant 0 : i32
    %c0_i32_1 = arith.constant 0 : i32
    return %c0_i32, %c0_i32_0 : i32, i32
  }
  func.func @transform_2(%arg0: i32) -> (i32, i32) {
    %c0_i32 = arith.constant 0 : i32
    %c0_i32_0 = arith.constant 0 : i32
    %c0_i32_1 = arith.constant 0 : i32
    return %c0_i32, %c0_i32_0 : i32, i32
  }
  func.func @transform_3(%arg0: i32) -> (i32, i32, i32, i32) {
    %c0_i32 = arith.constant 0 : i32
    %c0_i32_0 = arith.constant 0 : i32
    %c0_i32_1 = arith.constant 0 : i32
    %c0_i32_2 = arith.constant 0 : i32
    return %arg0, %c0_i32, %c0_i32_0, %c0_i32_1 : i32, i32, i32, i32
  }
}

</mosaic_0001>

<llo_original>
// kernel: tpu_custom_call.1
$region0: #{tpu_custom_call.1}
  #allocation0 [shape = 'u32[]', space=smem, size = 0x4, offset = 0x4, fixed_abs, tag = 'smem constant byte address 0x4 - core index']
  #allocation1 [shape = 'u32[144,128]{1,0:T(1,128)}', space=vmem, size = 0x12000, scoped, tag = 'internal scratch']
  %s0 = inlined_call_operand.hbm [shape: f32[2,32,32,147], index: 0, kind: input, shape index: {}]
  %s1 = inlined_call_operand.vmem [shape: bf16[147,32], index: 1, kind: input, shape index: {}]
  %s2 = inlined_call_operand.hbm [shape: f32[1,32], index: 2, kind: input, shape index: {}]
  %s3 = inlined_call_operand.hbm [shape: f32[2,32,32,32], index: 3, kind: output, shape index: {}]
  %s4 = sld [smem:[#allocation0]]
  $region53: #{tpu_custom_call.1} parent=0
    _
  %s6 = ssub.s32 1, %s4
  %s7 = scalar_select 0, %s6, %s4
  $region1: #{tpu_custom_call.1} parent=0
    #allocation2 [shape = 'u8[2097152]{0}', space=vmem, size = 0x200000, scoped, tag = 'input window, operand 0']
    #allocation3 [shape = 's32[2]{0}', space=sflag, size = 0x8, scoped, tag = 'scoped memory for tpu_custom_call.1']
    #allocation4 [shape = 's32[2]{0}', space=sflag, size = 0x8, scoped, tag = 'scoped memory for tpu_custom_call.1']
    #allocation5 [shape = 'u8[512]{0}', space=vmem, size = 0x400, scoped, tag = 'input window, operand 2, single buffered']
    #allocation6 [shape = 's32[1]{0}', space=sflag, size = 0x4, scoped, tag = 'scoped memory for tpu_custom_call.1']
    #allocation7 [shape = 'u8[1048576]{0}', space=vmem, size = 0x100000, scoped, tag = 'output window, operand 0']
    %8 = vsyncpa [#allocation3], 0
    %s9 = scalar_lea.sflag [#allocation3], 1
    %10 = vsyncpa %s9, 0
    %11 = vsyncpa [#allocation6], 0
    %12 = vsyncpa [#allocation4], 0
    %s13 = scalar_lea.sflag [#allocation4], 1
    %14 = vsyncpa %s13, 0
    loop: start=0, step=1, limit=4
    $region2: #{tpu_custom_call.1} parent=1 // loop_pre_header
      _
    $region3: #{tpu_custom_call.1} parent=1 // loop_header
      %s16 = sphi 0, %s20
      %p17 = scmp.ge.s32.totalorder %s16, 4
      %s26 = sphi 0, %s28
      %s29 = sphi 0, %s26
      %s30 = sphi 0, %s29
      %s46 = sphi 0, %s30
      %s50 = sphi 0, %s50
      %s52 = sphi 0, %s50
      %s53 = sphi 0, %s52
      %s67 = sphi 0, %s53
      %s71 = sphi 0, %s71
      %s73 = sphi 0, %s71
      %s74 = sphi 0, %s73
      %s88 = sphi 0, %s74
      %s94 = sphi 0, %s96
      %s97 = sphi 0, %s94
      %s98 = sphi 0, %s97
      %s114 = sphi 0, %s98
    $region4: #{tpu_custom_call.1} parent=1 // loop_header_branch
      %19 = sbr.rel (%p17) target = $region8
    $region5: #{tpu_custom_call.1} parent=1 // loop_body
      %s21 = ssub.s32 %s16, 1
      %s22 = ssub.s32 %s16, 2
      %s23 = sadd.s32 %s16, 1
      %s24 = ssub.s32 %s16, %s23
      %p25 = scmp.eq.s32.totalorder %s24, 0
      %s27 = sadd.s32 %s26, 1
      %s28 = scalar_select %p25, %s26, %s27
      %p31 = pneg %p25
      %p32 = scmp.eq.s32.totalorder %s16, 1
      %p33 = por %p31, %p32
      %p34 = scmp.ne.s32.totalorder %s26, %s29
      %p35 = scmp.eq.s32.totalorder %s16, 0
      %p36 = por %p34, %p35
      %p37 = scmp.ne.s32.totalorder %s26, %s29
      %p38 = scmp.eq.s32.totalorder %s21, 1
      %p39 = por %p37, %p38
      %p40 = scmp.ne.s32.totalorder %s29, %s30
      %p41 = scmp.eq.s32.totalorder %s21, 0
      %p42 = por %p40, %p41
      %p43 = scmp.ne.s32.totalorder %s29, %s30
      %p44 = scmp.eq.s32.totalorder %s22, 1
      %p45 = por %p43, %p44
      %p47 = scmp.ne.s32.totalorder %s30, %s46
      %p48 = scmp.eq.s32.totalorder %s22, 0
      %p49 = por %p47, %p48
      %s51 = sadd.s32 %s50, 1
      %p54 = scmp.eq.s32.totalorder %s16, 1
      %p55 = scmp.ne.s32.totalorder %s50, %s52
      %p56 = scmp.eq.s32.totalorder %s16, 0
      %p57 = por %p55, %p56
      %p58 = scmp.ne.s32.totalorder %s50, %s52
      %p59 = scmp.eq.s32.totalorder %s21, 1
      %p60 = por %p58, %p59
      %p61 = scmp.ne.s32.totalorder %s52, %s53
      %p62 = scmp.eq.s32.totalorder %s21, 0
      %p63 = por %p61, %p62
      %p64 = scmp.ne.s32.totalorder %s52, %s53
      %p65 = scmp.eq.s32.totalorder %s22, 1
      %p66 = por %p64, %p65
      %p68 = scmp.ne.s32.totalorder %s53, %s67
      %p69 = scmp.eq.s32.totalorder %s22, 0
      %p70 = por %p68, %p69
      %s72 = sadd.s32 %s71, 1
      %p75 = scmp.eq.s32.totalorder %s16, 1
      %p76 = scmp.ne.s32.totalorder %s71, %s73
      %p77 = scmp.eq.s32.totalorder %s16, 0
      %p78 = por %p76, %p77
      %p79 = scmp.ne.s32.totalorder %s71, %s73
      %p80 = scmp.eq.s32.totalorder %s21, 1
      %p81 = por %p79, %p80
      %p82 = scmp.ne.s32.totalorder %s73, %s74
      %p83 = scmp.eq.s32.totalorder %s21, 0
      %p84 = por %p82, %p83
      %p85 = scmp.ne.s32.totalorder %s73, %s74
      %p86 = scmp.eq.s32.totalorder %s22, 1
      %p87 = por %p85, %p86
      %p89 = scmp.ne.s32.totalorder %s74, %s88
      %p90 = scmp.eq.s32.totalorder %s22, 0
      %p91 = por %p89, %p90
      %s92 = ssub.s32 %s16, %s23
      %p93 = scmp.eq.s32.totalorder %s92, 0
      %s95 = sadd.s32 %s94, 1
      %s96 = scalar_select %p93, %s94, %s95
      %p99 = pneg %p93
      %p100 = scmp.eq.s32.totalorder %s16, 1
      %p101 = por %p99, %p100
      %p102 = scmp.ne.s32.totalorder %s94, %s97
      %p103 = scmp.eq.s32.totalorder %s16, 0
      %p104 = por %p102, %p103
      %p105 = scmp.ne.s32.totalorder %s94, %s97
      %p106 = scmp.eq.s32.totalorder %s21, 1
      %p107 = por %p105, %p106
      %p108 = scmp.ne.s32.totalorder %s97, %s98
      %p109 = scmp.eq.s32.totalorder %s21, 0
      %p110 = por %p108, %p109
      %p111 = scmp.ne.s32.totalorder %s97, %s98
      %p112 = scmp.eq.s32.totalorder %s22, 1
      %p113 = por %p111, %p112
      %p115 = scmp.ne.s32.totalorder %s98, %s114
      %p116 = scmp.eq.s32.totalorder %s22, 0
      %p117 = por %p115, %p116
      %p118 = scmp.le.s32.totalorder 1, %s16
      %p119 = scmp.lt.s32.totalorder %s16, 3
      %p120 = pnand %p118, %p119
      %p121 = pneg %p120
      // Predicated region
      $region9: #{tpu_custom_call.1} parent=5 // pred_check
        _
      $region10: #{tpu_custom_call.1} parent=5 // pred_check_branch
        %123 = sbr.rel (%p120) target = $region12
      $region11: #{tpu_custom_call.1} parent=5 // pred_region
        %s124 = ssub.s32 %s16, 1
        // Predicated region
        $region13: #{tpu_custom_call.1} parent=11 // pred_check
          %p125 = pneg %p63
        $region14: #{tpu_custom_call.1} parent=11 // pred_check_branch
          %127 = sbr.rel (%p125) target = $region16
        $region15: #{tpu_custom_call.1} parent=11 // pred_region
          _
        $region16: #{tpu_custom_call.1} parent=11 // pred_fallthru
          _
        // Predicated region
        $region17: #{tpu_custom_call.1} parent=11 // pred_check
          %p128 = pneg %p84
        $region18: #{tpu_custom_call.1} parent=11 // pred_check_branch
          %130 = sbr.rel (%p128) target = $region20
        $region19: #{tpu_custom_call.1} parent=11 // pred_region
          %s132 = ssub.s32 16, 16
          %133 = vsyncadd [#allocation6], %s132
          %s135 = sshll.u32 [#allocation5], 4
          %s136 = int_to_ptr.vmem [resolvable:$true] %s135
          %138 = dma.hbm_to_vmem [thread:$0]  %s2, 16, %s136, [#allocation6]
        $region20: #{tpu_custom_call.1} parent=11 // pred_fallthru
          _
      $region12: #{tpu_custom_call.1} parent=5 // pred_fallthru
        _
      %p139 = scmp.lt.s32.totalorder %s16, 2
      // Predicated region
      $region21: #{tpu_custom_call.1} parent=5 // pred_check
        %p140 = pneg %p139
      $region22: #{tpu_custom_call.1} parent=5 // pred_check_branch
        %142 = sbr.rel (%p140) target = $region24
      $region23: #{tpu_custom_call.1} parent=5 // pred_region
        // Predicated region
        $region25: #{tpu_custom_call.1} parent=23 // pred_check
          %p143 = pneg %p36
        $region26: #{tpu_custom_call.1} parent=23 // pred_check_branch
          %145 = sbr.rel (%p143) target = $region28
        $region27: #{tpu_custom_call.1} parent=23 // pred_region
          %s146 = sand.u32 %s26, 1
          %s147 = scalar_lea.sflag [#allocation3], %s146
          %s148 = sand.u32 %s26, 1
          %s149 = smul.addr %s148, 2048
          %s150 = scalar_lea.vmem [#allocation2], %s149
          %s152 = ssub.s32 32768, 32768
          %153 = vsyncadd %s147, %s152
          %s154 = smul.addr %s16, 256
          %s155 = smul.addr %s154, 128
          %s156 = scalar_lea.hbm %s0, %s155
          %s157 = sshll.u32 %s150, 4
          %s158 = int_to_ptr.vmem [resolvable:$true] %s157
          %163 = dma.hbm_to_vmem [thread:$0]  %s156, 32768, %s158, %s147, 256, 256, 16
        $region28: #{tpu_custom_call.1} parent=23 // pred_fallthru
          _
      $region24: #{tpu_custom_call.1} parent=5 // pred_fallthru
        _
      %p164 = scmp.le.s32.totalorder 1, %s16
      %p165 = scmp.lt.s32.totalorder %s16, 3
      %p166 = pnand %p164, %p165
      %p167 = pneg %p166
      // Predicated region
      $region29: #{tpu_custom_call.1} parent=5 // pred_check
        _
      $region30: #{tpu_custom_call.1} parent=5 // pred_check_branch
        %169 = sbr.rel (%p166) target = $region32
      $region31: #{tpu_custom_call.1} parent=5 // pred_region
        %s170 = ssub.s32 %s16, 1
        %s171 = sand.u32 %s29, 1
        %s172 = scalar_lea.sflag [#allocation3], %s171
        %s173 = sand.u32 %s29, 1
        %s174 = smul.addr %s173, 2048
        %s175 = scalar_lea.vmem [#allocation2], %s174
        // Predicated region
        $region33: #{tpu_custom_call.1} parent=31 // pred_check
          %p176 = pneg %p42
        $region34: #{tpu_custom_call.1} parent=31 // pred_check_branch
          %178 = sbr.rel (%p176) target = $region36
        $region35: #{tpu_custom_call.1} parent=31 // pred_region
          %179 = dma.done %s172, 32768
        $region36: #{tpu_custom_call.1} parent=31 // pred_fallthru
          _
        // Predicated region
        $region37: #{tpu_custom_call.1} parent=31 // pred_check
          %p180 = pneg %p84
        $region38: #{tpu_custom_call.1} parent=31 // pred_check_branch
          %182 = sbr.rel (%p180) target = $region40
        $region39: #{tpu_custom_call.1} parent=31 // pred_region
          %183 = dma.done [#allocation6], 16
        $region40: #{tpu_custom_call.1} parent=31 // pred_fallthru
          _
        %s184 = sand.u32 %s29, 1
        %s185 = scalar_lea.sflag [#allocation3], %s184
        %s186 = sand.u32 %s29, 1
        %s187 = smul.addr %s186, 2048
        %s188 = scalar_lea.vmem [#allocation2], %s187
        %p189 = pneg %p42
        %p190 = pneg %p39
        %p191 = pneg %p63
        %p192 = pneg %p60
        %p193 = pneg %p84
        %p194 = pneg %p81
        %p195 = pneg %p110
        %p196 = pneg %p107
        %s197 = sand.u32 %s97, 1
        %s198 = scalar_lea.sflag [#allocation4], %s197
        %s199 = sand.u32 %s97, 1
        %s200 = smul.addr %s199, 1024
        %s201 = scalar_lea.vmem [#allocation7], %s200
        %v203 = vld [vmem:[%s175] sm:$0xff]
        %v204 = vld [vmem:[%s175 + $0x8] sm:$0xff]
        %v205 = vld [vmem:[%s175 + $0x10] sm:$0xff]
        %v206 = vld [vmem:[%s175 + $0x18] sm:$0xff]
        %v207 = vld [vmem:[%s175 + $0x20] sm:$0xff]
        %v208 = vld [vmem:[%s175 + $0x28] sm:$0xff]
        %v209 = vld [vmem:[%s175 + $0x30] sm:$0xff]
        %v210 = vld [vmem:[%s175 + $0x38] sm:$0xff]
        %v211 = vld [vmem:[%s175 + $0x40] sm:$0xff]
        %v212 = vld [vmem:[%s175 + $0x48] sm:$0xff]
        %v213 = vld [vmem:[%s175 + $0x50] sm:$0xff]
        %v214 = vld [vmem:[%s175 + $0x58] sm:$0xff]
        %v215 = vld [vmem:[%s175 + $0x60] sm:$0xff]
        %v216 = vld [vmem:[%s175 + $0x68] sm:$0xff]
        %v217 = vld [vmem:[%s175 + $0x70] sm:$0xff]
        %v218 = vld [vmem:[%s175 + $0x78] sm:$0xff]
        %v219 = vld [vmem:[%s175 + $0x80] sm:$0xff]
        %v220 = vld [vmem:[%s175 + $0x88] sm:$0xff]
        %v221 = vld [vmem:[%s175 + $0x90] sm:$0xff]
        %v222 = vld [vmem:[%s175 + $0x98] sm:$0xff]
        %v223 = vld [vmem:[%s175 + $0xa0] sm:$0xff]
        %v224 = vld [vmem:[%s175 + $0xa8] sm:$0xff]
        %v225 = vld [vmem:[%s175 + $0xb0] sm:$0xff]
        %v226 = vld [vmem:[%s175 + $0xb8] sm:$0xff]
        %v227 = vld [vmem:[%s175 + $0xc0] sm:$0xff]
        %v228 = vld [vmem:[%s175 + $0xc8] sm:$0xff]
        %v229 = vld [vmem:[%s175 + $0xd0] sm:$0xff]
        %v230 = vld [vmem:[%s175 + $0xd8] sm:$0xff]
        %v231 = vld [vmem:[%s175 + $0xe0] sm:$0xff]
        %v232 = vld [vmem:[%s175 + $0xe8] sm:$0xff]
        %v233 = vld [vmem:[%s175 + $0xf0] sm:$0xff]
        %v234 = vld [vmem:[%s175 + $0xf8] sm:$0xff]
        %v235 = vld [vmem:[%s175 + $0x100] sm:$0xff]
        %v236 = vld [vmem:[%s175 + $0x108] sm:$0xff]
        %v237 = vld [vmem:[%s175 + $0x110] sm:$0xff]
        %v238 = vld [vmem:[%s175 + $0x118] sm:$0xff]
        %v239 = vld [vmem:[%s175 + $0x120] sm:$0xff]
        %v240 = vld [vmem:[%s175 + $0x128] sm:$0xff]
        %v241 = vld [vmem:[%s175 + $0x130] sm:$0xff]
        %v242 = vld [vmem:[%s175 + $0x138] sm:$0xff]
        %v243 = vld [vmem:[%s175 + $0x140] sm:$0xff]
        %v244 = vld [vmem:[%s175 + $0x148] sm:$0xff]
        %v245 = vld [vmem:[%s175 + $0x150] sm:$0xff]
        %v246 = vld [vmem:[%s175 + $0x158] sm:$0xff]
        %v247 = vld [vmem:[%s175 + $0x160] sm:$0xff]
        %v248 = vld [vmem:[%s175 + $0x168] sm:$0xff]
        %v249 = vld [vmem:[%s175 + $0x170] sm:$0xff]
        %v250 = vld [vmem:[%s175 + $0x178] sm:$0xff]
        %v251 = vld [vmem:[%s175 + $0x180] sm:$0xff]
        %v252 = vld [vmem:[%s175 + $0x188] sm:$0xff]
        %v253 = vld [vmem:[%s175 + $0x190] sm:$0xff]
        %v254 = vld [vmem:[%s175 + $0x198] sm:$0xff]
        %v255 = vld [vmem:[%s175 + $0x1a0] sm:$0xff]
        %v256 = vld [vmem:[%s175 + $0x1a8] sm:$0xff]
        %v257 = vld [vmem:[%s175 + $0x1b0] sm:$0xff]
        %v258 = vld [vmem:[%s175 + $0x1b8] sm:$0xff]
        %v259 = vld [vmem:[%s175 + $0x1c0] sm:$0xff]
        %v260 = vld [vmem:[%s175 + $0x1c8] sm:$0xff]
        %v261 = vld [vmem:[%s175 + $0x1d0] sm:$0xff]
        %v262 = vld [vmem:[%s175 + $0x1d8] sm:$0xff]
        %v263 = vld [vmem:[%s175 + $0x1e0] sm:$0xff]
        %v264 = vld [vmem:[%s175 + $0x1e8] sm:$0xff]
        %v265 = vld [vmem:[%s175 + $0x1f0] sm:$0xff]
        %v266 = vld [vmem:[%s175 + $0x1f8] sm:$0xff]
        %v267 = vld [vmem:[%s175 + $0x200] sm:$0xff]
        %v268 = vld [vmem:[%s175 + $0x208] sm:$0xff]
        %v269 = vld [vmem:[%s175 + $0x210] sm:$0xff]
        %v270 = vld [vmem:[%s175 + $0x218] sm:$0xff]
        %v271 = vld [vmem:[%s175 + $0x220] sm:$0xff]
        %v272 = vld [vmem:[%s175 + $0x228] sm:$0xff]
        %v273 = vld [vmem:[%s175 + $0x230] sm:$0xff]
        %v274 = vld [vmem:[%s175 + $0x238] sm:$0xff]
        %v275 = vld [vmem:[%s175 + $0x240] sm:$0xff]
        %v276 = vld [vmem:[%s175 + $0x248] sm:$0xff]
        %v277 = vld [vmem:[%s175 + $0x250] sm:$0xff]
        %v278 = vld [vmem:[%s175 + $0x258] sm:$0xff]
        %v279 = vld [vmem:[%s175 + $0x260] sm:$0xff]
        %v280 = vld [vmem:[%s175 + $0x268] sm:$0xff]
        %v281 = vld [vmem:[%s175 + $0x270] sm:$0xff]
        %v282 = vld [vmem:[%s175 + $0x278] sm:$0xff]
        %v283 = vld [vmem:[%s175 + $0x280] sm:$0xff]
        %v284 = vld [vmem:[%s175 + $0x288] sm:$0xff]
        %v285 = vld [vmem:[%s175 + $0x290] sm:$0xff]
        %v286 = vld [vmem:[%s175 + $0x298] sm:$0xff]
        %v287 = vld [vmem:[%s175 + $0x2a0] sm:$0xff]
        %v288 = vld [vmem:[%s175 + $0x2a8] sm:$0xff]
        %v289 = vld [vmem:[%s175 + $0x2b0] sm:$0xff]
        %v290 = vld [vmem:[%s175 + $0x2b8] sm:$0xff]
        %v291 = vld [vmem:[%s175 + $0x2c0] sm:$0xff]
        %v292 = vld [vmem:[%s175 + $0x2c8] sm:$0xff]
        %v293 = vld [vmem:[%s175 + $0x2d0] sm:$0xff]
        %v294 = vld [vmem:[%s175 + $0x2d8] sm:$0xff]
        %v295 = vld [vmem:[%s175 + $0x2e0] sm:$0xff]
        %v296 = vld [vmem:[%s175 + $0x2e8] sm:$0xff]
        %v297 = vld [vmem:[%s175 + $0x2f0] sm:$0xff]
        %v298 = vld [vmem:[%s175 + $0x2f8] sm:$0xff]
        %v299 = vld [vmem:[%s175 + $0x300] sm:$0xff]
        %v300 = vld [vmem:[%s175 + $0x308] sm:$0xff]
        %v301 = vld [vmem:[%s175 + $0x310] sm:$0xff]
        %v302 = vld [vmem:[%s175 + $0x318] sm:$0xff]
        %v303 = vld [vmem:[%s175 + $0x320] sm:$0xff]
        %v304 = vld [vmem:[%s175 + $0x328] sm:$0xff]
        %v305 = vld [vmem:[%s175 + $0x330] sm:$0xff]
        %v306 = vld [vmem:[%s175 + $0x338] sm:$0xff]
        %v307 = vld [vmem:[%s175 + $0x340] sm:$0xff]
        %v308 = vld [vmem:[%s175 + $0x348] sm:$0xff]
        %v309 = vld [vmem:[%s175 + $0x350] sm:$0xff]
        %v310 = vld [vmem:[%s175 + $0x358] sm:$0xff]
        %v311 = vld [vmem:[%s175 + $0x360] sm:$0xff]
        %v312 = vld [vmem:[%s175 + $0x368] sm:$0xff]
        %v313 = vld [vmem:[%s175 + $0x370] sm:$0xff]
        %v314 = vld [vmem:[%s175 + $0x378] sm:$0xff]
        %v315 = vld [vmem:[%s175 + $0x380] sm:$0xff]
        %v316 = vld [vmem:[%s175 + $0x388] sm:$0xff]
        %v317 = vld [vmem:[%s175 + $0x390] sm:$0xff]
        %v318 = vld [vmem:[%s175 + $0x398] sm:$0xff]
        %v319 = vld [vmem:[%s175 + $0x3a0] sm:$0xff]
        %v320 = vld [vmem:[%s175 + $0x3a8] sm:$0xff]
        %v321 = vld [vmem:[%s175 + $0x3b0] sm:$0xff]
        %v322 = vld [vmem:[%s175 + $0x3b8] sm:$0xff]
        %v323 = vld [vmem:[%s175 + $0x3c0] sm:$0xff]
        %v324 = vld [vmem:[%s175 + $0x3c8] sm:$0xff]
        %v325 = vld [vmem:[%s175 + $0x3d0] sm:$0xff]
        %v326 = vld [vmem:[%s175 + $0x3d8] sm:$0xff]
        %v327 = vld [vmem:[%s175 + $0x3e0] sm:$0xff]
        %v328 = vld [vmem:[%s175 + $0x3e8] sm:$0xff]
        %v329 = vld [vmem:[%s175 + $0x3f0] sm:$0xff]
        %v330 = vld [vmem:[%s175 + $0x3f8] sm:$0xff]
        %v331 = vld [vmem:[%s175 + $0x400] sm:$0xff]
        %v332 = vld [vmem:[%s175 + $0x408] sm:$0xff]
        %v333 = vld [vmem:[%s175 + $0x410] sm:$0xff]
        %v334 = vld [vmem:[%s175 + $0x418] sm:$0xff]
        %v335 = vld [vmem:[%s175 + $0x420] sm:$0xff]
        %v336 = vld [vmem:[%s175 + $0x428] sm:$0xff]
        %v337 = vld [vmem:[%s175 + $0x430] sm:$0xff]
        %v338 = vld [vmem:[%s175 + $0x438] sm:$0xff]
        %v339 = vld [vmem:[%s175 + $0x440] sm:$0xff]
        %v340 = vld [vmem:[%s175 + $0x448] sm:$0xff]
        %v341 = vld [vmem:[%s175 + $0x450] sm:$0xff]
        %v342 = vld [vmem:[%s175 + $0x458] sm:$0xff]
        %v343 = vld [vmem:[%s175 + $0x460] sm:$0xff]
        %v344 = vld [vmem:[%s175 + $0x468] sm:$0xff]
        %v345 = vld [vmem:[%s175 + $0x470] sm:$0xff]
        %v346 = vld [vmem:[%s175 + $0x478] sm:$0xff]
        %v347 = vld [vmem:[%s175 + $0x480] sm:$0xff]
        %v348 = vld [vmem:[%s175 + $0x488] sm:$0xff]
        %v349 = vld [vmem:[%s175 + $0x490] sm:$0xff]
        %v350 = vld [vmem:[%s175 + $0x498] sm:$0xff]
        %v351 = vld [vmem:[%s175 + $0x4a0] sm:$0xff]
        %v352 = vld [vmem:[%s175 + $0x4a8] sm:$0xff]
        %v353 = vld [vmem:[%s175 + $0x4b0] sm:$0xff]
        %v354 = vld [vmem:[%s175 + $0x4b8] sm:$0xff]
        %v355 = vld [vmem:[%s175 + $0x4c0] sm:$0xff]
        %v356 = vld [vmem:[%s175 + $0x4c8] sm:$0xff]
        %v357 = vld [vmem:[%s175 + $0x4d0] sm:$0xff]
        %v358 = vld [vmem:[%s175 + $0x4d8] sm:$0xff]
        %v359 = vld [vmem:[%s175 + $0x4e0] sm:$0xff]
        %v360 = vld [vmem:[%s175 + $0x4e8] sm:$0xff]
        %v361 = vld [vmem:[%s175 + $0x4f0] sm:$0xff]
        %v362 = vld [vmem:[%s175 + $0x4f8] sm:$0xff]
        %v363 = vld [vmem:[%s175 + $0x500] sm:$0xff]
        %v364 = vld [vmem:[%s175 + $0x508] sm:$0xff]
        %v365 = vld [vmem:[%s175 + $0x510] sm:$0xff]
        %v366 = vld [vmem:[%s175 + $0x518] sm:$0xff]
        %v367 = vld [vmem:[%s175 + $0x520] sm:$0xff]
        %v368 = vld [vmem:[%s175 + $0x528] sm:$0xff]
        %v369 = vld [vmem:[%s175 + $0x530] sm:$0xff]
        %v370 = vld [vmem:[%s175 + $0x538] sm:$0xff]
        %v371 = vld [vmem:[%s175 + $0x540] sm:$0xff]
        %v372 = vld [vmem:[%s175 + $0x548] sm:$0xff]
        %v373 = vld [vmem:[%s175 + $0x550] sm:$0xff]
        %v374 = vld [vmem:[%s175 + $0x558] sm:$0xff]
        %v375 = vld [vmem:[%s175 + $0x560] sm:$0xff]
        %v376 = vld [vmem:[%s175 + $0x568] sm:$0xff]
        %v377 = vld [vmem:[%s175 + $0x570] sm:$0xff]
        %v378 = vld [vmem:[%s175 + $0x578] sm:$0xff]
        %v379 = vld [vmem:[%s175 + $0x580] sm:$0xff]
        %v380 = vld [vmem:[%s175 + $0x588] sm:$0xff]
        %v381 = vld [vmem:[%s175 + $0x590] sm:$0xff]
        %v382 = vld [vmem:[%s175 + $0x598] sm:$0xff]
        %v383 = vld [vmem:[%s175 + $0x5a0] sm:$0xff]
        %v384 = vld [vmem:[%s175 + $0x5a8] sm:$0xff]
        %v385 = vld [vmem:[%s175 + $0x5b0] sm:$0xff]
        %v386 = vld [vmem:[%s175 + $0x5b8] sm:$0xff]
        %v387 = vld [vmem:[%s175 + $0x5c0] sm:$0xff]
        %v388 = vld [vmem:[%s175 + $0x5c8] sm:$0xff]
        %v389 = vld [vmem:[%s175 + $0x5d0] sm:$0xff]
        %v390 = vld [vmem:[%s175 + $0x5d8] sm:$0xff]
        %v391 = vld [vmem:[%s175 + $0x5e0] sm:$0xff]
        %v392 = vld [vmem:[%s175 + $0x5e8] sm:$0xff]
        %v393 = vld [vmem:[%s175 + $0x5f0] sm:$0xff]
        %v394 = vld [vmem:[%s175 + $0x5f8] sm:$0xff]
        %v395 = vld [vmem:[%s175 + $0x600] sm:$0xff]
        %v396 = vld [vmem:[%s175 + $0x608] sm:$0xff]
        %v397 = vld [vmem:[%s175 + $0x610] sm:$0xff]
        %v398 = vld [vmem:[%s175 + $0x618] sm:$0xff]
        %v399 = vld [vmem:[%s175 + $0x620] sm:$0xff]
        %v400 = vld [vmem:[%s175 + $0x628] sm:$0xff]
        %v401 = vld [vmem:[%s175 + $0x630] sm:$0xff]
        %v402 = vld [vmem:[%s175 + $0x638] sm:$0xff]
        %v403 = vld [vmem:[%s175 + $0x640] sm:$0xff]
        %v404 = vld [vmem:[%s175 + $0x648] sm:$0xff]
        %v405 = vld [vmem:[%s175 + $0x650] sm:$0xff]
        %v406 = vld [vmem:[%s175 + $0x658] sm:$0xff]
        %v407 = vld [vmem:[%s175 + $0x660] sm:$0xff]
        %v408 = vld [vmem:[%s175 + $0x668] sm:$0xff]
        %v409 = vld [vmem:[%s175 + $0x670] sm:$0xff]
        %v410 = vld [vmem:[%s175 + $0x678] sm:$0xff]
        %v411 = vld [vmem:[%s175 + $0x680] sm:$0xff]
        %v412 = vld [vmem:[%s175 + $0x688] sm:$0xff]
        %v413 = vld [vmem:[%s175 + $0x690] sm:$0xff]
        %v414 = vld [vmem:[%s175 + $0x698] sm:$0xff]
        %v415 = vld [vmem:[%s175 + $0x6a0] sm:$0xff]
        %v416 = vld [vmem:[%s175 + $0x6a8] sm:$0xff]
        %v417 = vld [vmem:[%s175 + $0x6b0] sm:$0xff]
        %v418 = vld [vmem:[%s175 + $0x6b8] sm:$0xff]
        %v419 = vld [vmem:[%s175 + $0x6c0] sm:$0xff]
        %v420 = vld [vmem:[%s175 + $0x6c8] sm:$0xff]
        %v421 = vld [vmem:[%s175 + $0x6d0] sm:$0xff]
        %v422 = vld [vmem:[%s175 + $0x6d8] sm:$0xff]
        %v423 = vld [vmem:[%s175 + $0x6e0] sm:$0xff]
        %v424 = vld [vmem:[%s175 + $0x6e8] sm:$0xff]
        %v425 = vld [vmem:[%s175 + $0x6f0] sm:$0xff]
        %v426 = vld [vmem:[%s175 + $0x6f8] sm:$0xff]
        %v427 = vld [vmem:[%s175 + $0x700] sm:$0xff]
        %v428 = vld [vmem:[%s175 + $0x708] sm:$0xff]
        %v429 = vld [vmem:[%s175 + $0x710] sm:$0xff]
        %v430 = vld [vmem:[%s175 + $0x718] sm:$0xff]
        %v431 = vld [vmem:[%s175 + $0x720] sm:$0xff]
        %v432 = vld [vmem:[%s175 + $0x728] sm:$0xff]
        %v433 = vld [vmem:[%s175 + $0x730] sm:$0xff]
        %v434 = vld [vmem:[%s175 + $0x738] sm:$0xff]
        %v435 = vld [vmem:[%s175 + $0x740] sm:$0xff]
        %v436 = vld [vmem:[%s175 + $0x748] sm:$0xff]
        %v437 = vld [vmem:[%s175 + $0x750] sm:$0xff]
        %v438 = vld [vmem:[%s175 + $0x758] sm:$0xff]
        %v439 = vld [vmem:[%s175 + $0x760] sm:$0xff]
        %v440 = vld [vmem:[%s175 + $0x768] sm:$0xff]
        %v441 = vld [vmem:[%s175 + $0x770] sm:$0xff]
        %v442 = vld [vmem:[%s175 + $0x778] sm:$0xff]
        %v443 = vld [vmem:[%s175 + $0x780] sm:$0xff]
        %v444 = vld [vmem:[%s175 + $0x788] sm:$0xff]
        %v445 = vld [vmem:[%s175 + $0x790] sm:$0xff]
        %v446 = vld [vmem:[%s175 + $0x798] sm:$0xff]
        %v447 = vld [vmem:[%s175 + $0x7a0] sm:$0xff]
        %v448 = vld [vmem:[%s175 + $0x7a8] sm:$0xff]
        %v449 = vld [vmem:[%s175 + $0x7b0] sm:$0xff]
        %v450 = vld [vmem:[%s175 + $0x7b8] sm:$0xff]
        %v451 = vld [vmem:[%s175 + $0x7c0] sm:$0xff]
        %v452 = vld [vmem:[%s175 + $0x7c8] sm:$0xff]
        %v453 = vld [vmem:[%s175 + $0x7d0] sm:$0xff]
        %v454 = vld [vmem:[%s175 + $0x7d8] sm:$0xff]
        %v455 = vld [vmem:[%s175 + $0x7e0] sm:$0xff]
        %v456 = vld [vmem:[%s175 + $0x7e8] sm:$0xff]
        %v457 = vld [vmem:[%s175 + $0x7f0] sm:$0xff]
        %v458 = vld [vmem:[%s175 + $0x7f8] sm:$0xff]
        %v459 = vpack.c.bf16 %v205, %v203
        %v460 = vpack.c.bf16 %v206, %v204
        %v461 = vpack.c.bf16 %v209, %v207
        %v462 = vpack.c.bf16 %v210, %v208
        %v463 = vpack.c.bf16 %v213, %v211
        %v464 = vpack.c.bf16 %v214, %v212
        %v465 = vpack.c.bf16 %v217, %v215
        %v466 = vpack.c.bf16 %v218, %v216
        %v467 = vpack.c.bf16 %v221, %v219
        %v468 = vpack.c.bf16 %v222, %v220
        %v469 = vpack.c.bf16 %v225, %v223
        %v470 = vpack.c.bf16 %v226, %v224
        %v471 = vpack.c.bf16 %v229, %v227
        %v472 = vpack.c.bf16 %v230, %v228
        %v473 = vpack.c.bf16 %v233, %v231
        %v474 = vpack.c.bf16 %v234, %v232
        %v475 = vpack.c.bf16 %v237, %v235
        %v476 = vpack.c.bf16 %v238, %v236
        %v477 = vpack.c.bf16 %v241, %v239
        %v478 = vpack.c.bf16 %v242, %v240
        %v479 = vpack.c.bf16 %v245, %v243
        %v480 = vpack.c.bf16 %v246, %v244
        %v481 = vpack.c.bf16 %v249, %v247
        %v482 = vpack.c.bf16 %v250, %v248
        %v483 = vpack.c.bf16 %v253, %v251
        %v484 = vpack.c.bf16 %v254, %v252
        %v485 = vpack.c.bf16 %v257, %v255
        %v486 = vpack.c.bf16 %v258, %v256
        %v487 = vpack.c.bf16 %v261, %v259
        %v488 = vpack.c.bf16 %v262, %v260
        %v489 = vpack.c.bf16 %v265, %v263
        %v490 = vpack.c.bf16 %v266, %v264
        %v491 = vpack.c.bf16 %v269, %v267
        %v492 = vpack.c.bf16 %v270, %v268
        %v493 = vpack.c.bf16 %v273, %v271
        %v494 = vpack.c.bf16 %v274, %v272
        %v495 = vpack.c.bf16 %v277, %v275
        %v496 = vpack.c.bf16 %v278, %v276
        %v497 = vpack.c.bf16 %v281, %v279
        %v498 = vpack.c.bf16 %v282, %v280
        %v499 = vpack.c.bf16 %v285, %v283
        %v500 = vpack.c.bf16 %v286, %v284
        %v501 = vpack.c.bf16 %v289, %v287
        %v502 = vpack.c.bf16 %v290, %v288
        %v503 = vpack.c.bf16 %v293, %v291
        %v504 = vpack.c.bf16 %v294, %v292
        %v505 = vpack.c.bf16 %v297, %v295
        %v506 = vpack.c.bf16 %v298, %v296
        %v507 = vpack.c.bf16 %v301, %v299
        %v508 = vpack.c.bf16 %v302, %v300
        %v509 = vpack.c.bf16 %v305, %v303
        %v510 = vpack.c.bf16 %v306, %v304
        %v511 = vpack.c.bf16 %v309, %v307
        %v512 = vpack.c.bf16 %v310, %v308
        %v513 = vpack.c.bf16 %v313, %v311
        %v514 = vpack.c.bf16 %v314, %v312
        %v515 = vpack.c.bf16 %v317, %v315
        %v516 = vpack.c.bf16 %v318, %v316
        %v517 = vpack.c.bf16 %v321, %v319
        %v518 = vpack.c.bf16 %v322, %v320
        %v519 = vpack.c.bf16 %v325, %v323
        %v520 = vpack.c.bf16 %v326, %v324
        %v521 = vpack.c.bf16 %v329, %v327
        %v522 = vpack.c.bf16 %v330, %v328
        %v523 = vpack.c.bf16 %v333, %v331
        %v524 = vpack.c.bf16 %v334, %v332
        %v525 = vpack.c.bf16 %v337, %v335
        %v526 = vpack.c.bf16 %v338, %v336
        %v527 = vpack.c.bf16 %v341, %v339
        %v528 = vpack.c.bf16 %v342, %v340
        %v529 = vpack.c.bf16 %v345, %v343
        %v530 = vpack.c.bf16 %v346, %v344
        %v531 = vpack.c.bf16 %v349, %v347
        %v532 = vpack.c.bf16 %v350, %v348
        %v533 = vpack.c.bf16 %v353, %v351
        %v534 = vpack.c.bf16 %v354, %v352
        %v535 = vpack.c.bf16 %v357, %v355
        %v536 = vpack.c.bf16 %v358, %v356
        %v537 = vpack.c.bf16 %v361, %v359
        %v538 = vpack.c.bf16 %v362, %v360
        %v539 = vpack.c.bf16 %v365, %v363
        %v540 = vpack.c.bf16 %v366, %v364
        %v541 = vpack.c.bf16 %v369, %v367
        %v542 = vpack.c.bf16 %v370, %v368
        %v543 = vpack.c.bf16 %v373, %v371
        %v544 = vpack.c.bf16 %v374, %v372
        %v545 = vpack.c.bf16 %v377, %v375
        %v546 = vpack.c.bf16 %v378, %v376
        %v547 = vpack.c.bf16 %v381, %v379
        %v548 = vpack.c.bf16 %v382, %v380
        %v549 = vpack.c.bf16 %v385, %v383
        %v550 = vpack.c.bf16 %v386, %v384
        %v551 = vpack.c.bf16 %v389, %v387
        %v552 = vpack.c.bf16 %v390, %v388
        %v553 = vpack.c.bf16 %v393, %v391
        %v554 = vpack.c.bf16 %v394, %v392
        %v555 = vpack.c.bf16 %v397, %v395
        %v556 = vpack.c.bf16 %v398, %v396
        %v557 = vpack.c.bf16 %v401, %v399
        %v558 = vpack.c.bf16 %v402, %v400
        %v559 = vpack.c.bf16 %v405, %v403
        %v560 = vpack.c.bf16 %v406, %v404
        %v561 = vpack.c.bf16 %v409, %v407
        %v562 = vpack.c.bf16 %v410, %v408
        %v563 = vpack.c.bf16 %v413, %v411
        %v564 = vpack.c.bf16 %v414, %v412
        %v565 = vpack.c.bf16 %v417, %v415
        %v566 = vpack.c.bf16 %v418, %v416
        %v567 = vpack.c.bf16 %v421, %v419
        %v568 = vpack.c.bf16 %v422, %v420
        %v569 = vpack.c.bf16 %v425, %v423
        %v570 = vpack.c.bf16 %v426, %v424
        %v571 = vpack.c.bf16 %v429, %v427
        %v572 = vpack.c.bf16 %v430, %v428
        %v573 = vpack.c.bf16 %v433, %v431
        %v574 = vpack.c.bf16 %v434, %v432
        %v575 = vpack.c.bf16 %v437, %v435
        %v576 = vpack.c.bf16 %v438, %v436
        %v577 = vpack.c.bf16 %v441, %v439
        %v578 = vpack.c.bf16 %v442, %v440
        %v579 = vpack.c.bf16 %v445, %v443
        %v580 = vpack.c.bf16 %v446, %v444
        %v581 = vpack.c.bf16 %v449, %v447
        %v582 = vpack.c.bf16 %v450, %v448
        %v583 = vpack.c.bf16 %v453, %v451
        %v584 = vpack.c.bf16 %v454, %v452
        %v585 = vpack.c.bf16 %v457, %v455
        %v586 = vpack.c.bf16 %v458, %v456
        %v587 = vld [vmem:[%s1] sm:$0xf]
        %v588 = vld [vmem:[%s1 + $0x4] sm:$0xf]
        %v589 = vld [vmem:[%s1 + $0x8] sm:$0xf]
        %v590 = vld [vmem:[%s1 + $0xc] sm:$0xf]
        %v591 = vld [vmem:[%s1 + $0x10] sm:$0xf]
        %v592 = vld [vmem:[%s1 + $0x14] sm:$0xf]
        %v593 = vld [vmem:[%s1 + $0x18] sm:$0xf]
        %v594 = vld [vmem:[%s1 + $0x1c] sm:$0xf]
        %v595 = vld [vmem:[%s1 + $0x20] sm:$0xf]
        %v596 = vld [vmem:[%s1 + $0x24] sm:$0xf]
        %v597 = vld [vmem:[%s1 + $0x28] sm:$0xf]
        %v598 = vld [vmem:[%s1 + $0x2c] sm:$0xf]
        %v599 = vld [vmem:[%s1 + $0x30] sm:$0xf]
        %v600 = vld [vmem:[%s1 + $0x34] sm:$0xf]
        %v601 = vld [vmem:[%s1 + $0x38] sm:$0xf]
        %v602 = vld [vmem:[%s1 + $0x3c] sm:$0xf]
        %v603 = vld [vmem:[%s1 + $0x40] sm:$0xf]
        %v604 = vld [vmem:[%s1 + $0x44] sm:$0xf]
        %v605 = vld [vmem:[%s1 + $0x48] sm:$0x3]
        %v606 = vld [vmem:[#allocation5] sm:$0x1]
        %v608 = vlaneseq
        %v609 = vshrl.u32 %v608, 7
        %v610 = vsub.s32 0, %v609
        %v611 = vrot.slane %v606, %v610
        %v632 = vunpack.c.l.b16 %v587
        %v633 = vunpack.c.l.b16 %v588
        %v634 = vunpack.c.l.b16 %v589
        %v635 = vunpack.c.l.b16 %v590
        %v636 = vunpack.c.l.b16 %v591
        %v637 = vunpack.c.l.b16 %v592
        %v638 = vunpack.c.l.b16 %v593
        %v639 = vunpack.c.l.b16 %v594
        %v640 = vunpack.c.l.b16 %v595
        %v641 = vunpack.c.l.b16 %v596
        %v642 = vunpack.c.l.b16 %v597
        %v643 = vunpack.c.l.b16 %v598
        %v644 = vunpack.c.l.b16 %v599
        %v645 = vunpack.c.l.b16 %v600
        %v646 = vunpack.c.l.b16 %v601
        %v647 = vunpack.c.l.b16 %v602
        %v648 = vunpack.c.l.b16 %v603
        %v649 = vunpack.c.l.b16 %v604
        %v650 = vunpack.c.l.b16 %v605
        %v651 = vpack.c.b16 %v633, %v632
        %v652 = vpack.c.b16 %v635, %v634
        %v653 = vpack.c.b16 %v637, %v636
        %v654 = vpack.c.b16 %v639, %v638
        %v655 = vpack.c.b16 %v641, %v640
        %v656 = vpack.c.b16 %v643, %v642
        %v657 = vpack.c.b16 %v645, %v644
        %v658 = vpack.c.b16 %v647, %v646
        %v659 = vpack.c.b16 %v649, %v648
        %v660 = vpack.c.b16 %v650, %v650
        %vm670 = vcmask 154624
        %v672 = vsel %vm670, %v460, 0
        %v675 = vsel %vm670, %v462, 0
        %v678 = vsel %vm670, %v464, 0
        %v681 = vsel %vm670, %v466, 0
        %v684 = vsel %vm670, %v468, 0
        %v687 = vsel %vm670, %v470, 0
        %v690 = vsel %vm670, %v472, 0
        %v693 = vsel %vm670, %v474, 0
        %v696 = vsel %vm670, %v476, 0
        %v699 = vsel %vm670, %v478, 0
        %v702 = vsel %vm670, %v480, 0
        %v705 = vsel %vm670, %v482, 0
        %v708 = vsel %vm670, %v484, 0
        %v711 = vsel %vm670, %v486, 0
        %v714 = vsel %vm670, %v488, 0
        %v717 = vsel %vm670, %v490, 0
        %v720 = vsel %vm670, %v492, 0
        %v723 = vsel %vm670, %v494, 0
        %v726 = vsel %vm670, %v496, 0
        %v729 = vsel %vm670, %v498, 0
        %v732 = vsel %vm670, %v500, 0
        %v735 = vsel %vm670, %v502, 0
        %v738 = vsel %vm670, %v504, 0
        %v741 = vsel %vm670, %v506, 0
        %v744 = vsel %vm670, %v508, 0
        %v747 = vsel %vm670, %v510, 0
        %v750 = vsel %vm670, %v512, 0
        %v753 = vsel %vm670, %v514, 0
        %v756 = vsel %vm670, %v516, 0
        %v759 = vsel %vm670, %v518, 0
        %v762 = vsel %vm670, %v520, 0
        %v765 = vsel %vm670, %v522, 0
        %v768 = vsel %vm670, %v524, 0
        %v771 = vsel %vm670, %v526, 0
        %v774 = vsel %vm670, %v528, 0
        %v777 = vsel %vm670, %v530, 0
        %v780 = vsel %vm670, %v532, 0
        %v783 = vsel %vm670, %v534, 0
        %v786 = vsel %vm670, %v536, 0
        %v789 = vsel %vm670, %v538, 0
        %v792 = vsel %vm670, %v540, 0
        %v795 = vsel %vm670, %v542, 0
        %v798 = vsel %vm670, %v544, 0
        %v801 = vsel %vm670, %v546, 0
        %v804 = vsel %vm670, %v548, 0
        %v807 = vsel %vm670, %v550, 0
        %v810 = vsel %vm670, %v552, 0
        %v813 = vsel %vm670, %v554, 0
        %v816 = vsel %vm670, %v556, 0
        %v819 = vsel %vm670, %v558, 0
        %v822 = vsel %vm670, %v560, 0
        %v825 = vsel %vm670, %v562, 0
        %v828 = vsel %vm670, %v564, 0
        %v831 = vsel %vm670, %v566, 0
        %v834 = vsel %vm670, %v568, 0
        %v837 = vsel %vm670, %v570, 0
        %v840 = vsel %vm670, %v572, 0
        %v843 = vsel %vm670, %v574, 0
        %v846 = vsel %vm670, %v576, 0
        %v849 = vsel %vm670, %v578, 0
        %v852 = vsel %vm670, %v580, 0
        %v855 = vsel %vm670, %v582, 0
        %v858 = vsel %vm670, %v584, 0
        %v861 = vsel %vm670, %v586, 0
        %vm863 = vcmask 1040384
        %vm864 = vcmask 1041408
        %v865 = vsel %vm863, 4294967295, 65535
        %v866 = vsel %vm864, %v865, 0
        %v868 = vand.u32 %v660, %v866
        %870 = vmatprep.subr.bf16.mxu0 0
        %871 = vmatpush1.bf16.msra.mxu0 %v651
        %872 = vmatprep.subr.bf16.mxu0 0
        %873 = vmatpush1.bf16.msra.mxu0 %v652
        %874 = vmatprep.subr.bf16.mxu0 0
        %875 = vmatpush1.bf16.msra.mxu0 %v653
        %876 = vmatprep.subr.bf16.mxu0 0
        %877 = vmatpush1.bf16.msra.mxu0 %v654
        %878 = vmatprep.subr.bf16.mxu0 0
        %879 = vmatpush1.bf16.msra.mxu0 %v655
        %880 = vmatprep.subr.bf16.mxu0 0
        %881 = vmatpush1.bf16.msra.mxu0 %v656
        %882 = vmatprep.subr.bf16.mxu0 0
        %883 = vmatpush1.bf16.msra.mxu0 %v657
        %884 = vmatprep.subr.bf16.mxu0 0
        %885 = vmatpush1.bf16.msra.mxu0 %v658
        %886 = vmatprep.subr.bf16.mxu0 0
        %887 = vmatpush1.bf16.msra.mxu0 %v659
        %888 = vmatprep.subr.bf16.mxu0 0
        %889 = vmatpush1.bf16.msra.mxu0 %v868
        %890 = vmatprep.subr.bf16.mxu0 0
        %891 = vmatpush1.bf16.msra.mxu0 0
        %892 = vmatprep.subr.bf16.mxu0 0
        %893 = vmatpush1.bf16.msra.mxu0 0
        %894 = vmatprep.subr.bf16.mxu0 0
        %895 = vmatpush1.bf16.msra.mxu0 0
        %896 = vmatprep.subr.bf16.mxu0 0
        %897 = vmatpush1.bf16.msra.mxu0 0
        %898 = vmatprep.subr.bf16.mxu0 0
        %899 = vmatpush1.bf16.msra.mxu0 0
        %900 = vmatprep.subr.bf16.mxu0 0
        %901 = vmatpush1.bf16.msra.mxu0 0
        %902 = vmatprep.mubr.bf16.mxu0 %v672
        %903 = vmatmul.mubr.bf16.gmra.mrb[0].mxu0 %v459
        %v904 = vpop.f32.mrb[0].mxu0
        %v905 = vadd.f32 %v611, %v904
        %v906 = vpop.f32.mrb[0].mxu0
        %v907 = vpop.f32.mrb[0].mxu0
        %v908 = vadd.f32 %v611, %v907
        %v909 = vpop.f32.mrb[0].mxu0
        %910 = vmatprep.mubr.bf16.mxu0 %v675
        %911 = vmatmul.mubr.bf16.gmra.mrb[0].mxu0 %v461
        %v912 = vpop.f32.mrb[0].mxu0
        %v913 = vadd.f32 %v611, %v912
        %v914 = vpop.f32.mrb[0].mxu0
        %v915 = vpop.f32.mrb[0].mxu0
        %v916 = vadd.f32 %v611, %v915
        %v917 = vpop.f32.mrb[0].mxu0
        %918 = vmatprep.mubr.bf16.mxu0 %v678
        %919 = vmatmul.mubr.bf16.gmra.mrb[0].mxu0 %v463
        %v920 = vpop.f32.mrb[0].mxu0
        %v921 = vadd.f32 %v611, %v920
        %v922 = vpop.f32.mrb[0].mxu0
        %v923 = vpop.f32.mrb[0].mxu0
        %v924 = vadd.f32 %v611, %v923
        %v925 = vpop.f32.mrb[0].mxu0
        %926 = vmatprep.mubr.bf16.mxu0 %v681
        %927 = vmatmul.mubr.bf16.gmra.mrb[0].mxu0 %v465
        %v928 = vpop.f32.mrb[0].mxu0
        %v929 = vadd.f32 %v611, %v928
        %v930 = vpop.f32.mrb[0].mxu0
        %v931 = vpop.f32.mrb[0].mxu0
        %v932 = vadd.f32 %v611, %v931
        %v933 = vpop.f32.mrb[0].mxu0
        %934 = vmatprep.mubr.bf16.mxu0 %v684
        %935 = vmatmul.mubr.bf16.gmra.mrb[0].mxu0 %v467
        %v936 = vpop.f32.mrb[0].mxu0
        %v937 = vadd.f32 %v611, %v936
        %v938 = vpop.f32.mrb[0].mxu0
        %v939 = vpop.f32.mrb[0].mxu0
        %v940 = vadd.f32 %v611, %v939
        %v941 = vpop.f32.mrb[0].mxu0
        %942 = vmatprep.mubr.bf16.mxu0 %v687
        %943 = vmatmul.mubr.bf16.gmra.mrb[0].mxu0 %v469
        %v944 = vpop.f32.mrb[0].mxu0
        %v945 = vadd.f32 %v611, %v944
        %v946 = vpop.f32.mrb[0].mxu0
        %v947 = vpop.f32.mrb[0].mxu0
        %v948 = vadd.f32 %v611, %v947
        %v949 = vpop.f32.mrb[0].mxu0
        %950 = vmatprep.mubr.bf16.mxu0 %v690
        %951 = vmatmul.mubr.bf16.gmra.mrb[0].mxu0 %v471
        %v952 = vpop.f32.mrb[0].mxu0
        %v953 = vadd.f32 %v611, %v952
        %v954 = vpop.f32.mrb[0].mxu0
        %v955 = vpop.f32.mrb[0].mxu0
        %v956 = vadd.f32 %v611, %v955
        %v957 = vpop.f32.mrb[0].mxu0
        %958 = vmatprep.mubr.bf16.mxu0 %v693
        %959 = vmatmul.mubr.bf16.gmra.mrb[0].mxu0 %v473
        %v960 = vpop.f32.mrb[0].mxu0
        %v961 = vadd.f32 %v611, %v960
        %v962 = vpop.f32.mrb[0].mxu0
        %v963 = vpop.f32.mrb[0].mxu0
        %v964 = vadd.f32 %v611, %v963
        %v965 = vpop.f32.mrb[0].mxu0
        %966 = vmatprep.mubr.bf16.mxu0 %v696
        %967 = vmatmul.mubr.bf16.gmra.mrb[0].mxu0 %v475
        %v968 = vpop.f32.mrb[0].mxu0
        %v969 = vadd.f32 %v611, %v968
        %v970 = vpop.f32.mrb[0].mxu0
        %v971 = vpop.f32.mrb[0].mxu0
        %v972 = vadd.f32 %v611, %v971
        %v973 = vpop.f32.mrb[0].mxu0
        %974 = vmatprep.mubr.bf16.mxu0 %v699
        %975 = vmatmul.mubr.bf16.gmra.mrb[0].mxu0 %v477
        %v976 = vpop.f32.mrb[0].mxu0
        %v977 = vadd.f32 %v611, %v976
        %v978 = vpop.f32.mrb[0].mxu0
        %v979 = vpop.f32.mrb[0].mxu0
        %v980 = vadd.f32 %v611, %v979
        %v981 = vpop.f32.mrb[0].mxu0
        %982 = vmatprep.mubr.bf16.mxu0 %v702
        %983 = vmatmul.mubr.bf16.gmra.mrb[0].mxu0 %v479
        %v984 = vpop.f32.mrb[0].mxu0
        %v985 = vadd.f32 %v611, %v984
        %v986 = vpop.f32.mrb[0].mxu0
        %v987 = vpop.f32.mrb[0].mxu0
        %v988 = vadd.f32 %v611, %v987
        %v989 = vpop.f32.mrb[0].mxu0
        %990 = vmatprep.mubr.bf16.mxu0 %v705
        %991 = vmatmul.mubr.bf16.gmra.mrb[0].mxu0 %v481
        %v992 = vpop.f32.mrb[0].mxu0
        %v993 = vadd.f32 %v611, %v992
        %v994 = vpop.f32.mrb[0].mxu0
        %v995 = vpop.f32.mrb[0].mxu0
        %v996 = vadd.f32 %v611, %v995
        %v997 = vpop.f32.mrb[0].mxu0
        %998 = vmatprep.mubr.bf16.mxu0 %v708
        %999 = vmatmul.mubr.bf16.gmra.mrb[0].mxu0 %v483
        %v1000 = vpop.f32.mrb[0].mxu0
        %v1001 = vadd.f32 %v611, %v1000
        %v1002 = vpop.f32.mrb[0].mxu0
        %v1003 = vpop.f32.mrb[0].mxu0
        %v1004 = vadd.f32 %v611, %v1003
        %v1005 = vpop.f32.mrb[0].mxu0
        %1006 = vmatprep.mubr.bf16.mxu0 %v711
        %1007 = vmatmul.mubr.bf16.gmra.mrb[0].mxu0 %v485
        %v1008 = vpop.f32.mrb[0].mxu0
        %v1009 = vadd.f32 %v611, %v1008
        %v1010 = vpop.f32.mrb[0].mxu0
        %v1011 = vpop.f32.mrb[0].mxu0
        %v1012 = vadd.f32 %v611, %v1011
        %v1013 = vpop.f32.mrb[0].mxu0
        %1014 = vmatprep.mubr.bf16.mxu0 %v714
        %1015 = vmatmul.mubr.bf16.gmra.mrb[0].mxu0 %v487
        %v1016 = vpop.f32.mrb[0].mxu0
        %v1017 = vadd.f32 %v611, %v1016
        %v1018 = vpop.f32.mrb[0].mxu0
        %v1019 = vpop.f32.mrb[0].mxu0
        %v1020 = vadd.f32 %v611, %v1019
        %v1021 = vpop.f32.mrb[0].mxu0
        %1022 = vmatprep.mubr.bf16.mxu0 %v717
        %1023 = vmatmul.mubr.bf16.gmra.mrb[0].mxu0 %v489
        %v1024 = vpop.f32.mrb[0].mxu0
        %v1025 = vadd.f32 %v611, %v1024
        %v1026 = vpop.f32.mrb[0].mxu0
        %v1027 = vpop.f32.mrb[0].mxu0
        %v1028 = vadd.f32 %v611, %v1027
        %v1029 = vpop.f32.mrb[0].mxu0
        %1030 = vmatprep.mubr.bf16.mxu0 %v720
        %1031 = vmatmul.mubr.bf16.gmra.mrb[0].mxu0 %v491
        %v1032 = vpop.f32.mrb[0].mxu0
        %v1033 = vadd.f32 %v611, %v1032
        %v1034 = vpop.f32.mrb[0].mxu0
        %v1035 = vpop.f32.mrb[0].mxu0
        %v1036 = vadd.f32 %v611, %v1035
        %v1037 = vpop.f32.mrb[0].mxu0
        %1038 = vmatprep.mubr.bf16.mxu0 %v723
        %1039 = vmatmul.mubr.bf16.gmra.mrb[0].mxu0 %v493
        %v1040 = vpop.f32.mrb[0].mxu0
        %v1041 = vadd.f32 %v611, %v1040
        %v1042 = vpop.f32.mrb[0].mxu0
        %v1043 = vpop.f32.mrb[0].mxu0
        %v1044 = vadd.f32 %v611, %v1043
        %v1045 = vpop.f32.mrb[0].mxu0
        %1046 = vmatprep.mubr.bf16.mxu0 %v726
        %1047 = vmatmul.mubr.bf16.gmra.mrb[0].mxu0 %v495
        %v1048 = vpop.f32.mrb[0].mxu0
        %v1049 = vadd.f32 %v611, %v1048
        %v1050 = vpop.f32.mrb[0].mxu0
        %v1051 = vpop.f32.mrb[0].mxu0
        %v1052 = vadd.f32 %v611, %v1051
        %v1053 = vpop.f32.mrb[0].mxu0
        %1054 = vmatprep.mubr.bf16.mxu0 %v729
        %1055 = vmatmul.mubr.bf16.gmra.mrb[0].mxu0 %v497
        %v1056 = vpop.f32.mrb[0].mxu0
        %v1057 = vadd.f32 %v611, %v1056
        %v1058 = vpop.f32.mrb[0].mxu0
        %v1059 = vpop.f32.mrb[0].mxu0
        %v1060 = vadd.f32 %v611, %v1059
        %v1061 = vpop.f32.mrb[0].mxu0
        %1062 = vmatprep.mubr.bf16.mxu0 %v732
        %1063 = vmatmul.mubr.bf16.gmra.mrb[0].mxu0 %v499
        %v1064 = vpop.f32.mrb[0].mxu0
        %v1065 = vadd.f32 %v611, %v1064
        %v1066 = vpop.f32.mrb[0].mxu0
        %v1067 = vpop.f32.mrb[0].mxu0
        %v1068 = vadd.f32 %v611, %v1067
        %v1069 = vpop.f32.mrb[0].mxu0
        %1070 = vmatprep.mubr.bf16.mxu0 %v735
        %1071 = vmatmul.mubr.bf16.gmra.mrb[0].mxu0 %v501
        %v1072 = vpop.f32.mrb[0].mxu0
        %v1073 = vadd.f32 %v611, %v1072
        %v1074 = vpop.f32.mrb[0].mxu0
        %v1075 = vpop.f32.mrb[0].mxu0
        %v1076 = vadd.f32 %v611, %v1075
        %v1077 = vpop.f32.mrb[0].mxu0
        %1078 = vmatprep.mubr.bf16.mxu0 %v738
        %1079 = vmatmul.mubr.bf16.gmra.mrb[0].mxu0 %v503
        %v1080 = vpop.f32.mrb[0].mxu0
        %v1081 = vadd.f32 %v611, %v1080
        %v1082 = vpop.f32.mrb[0].mxu0
        %v1083 = vpop.f32.mrb[0].mxu0
        %v1084 = vadd.f32 %v611, %v1083
        %v1085 = vpop.f32.mrb[0].mxu0
        %1086 = vmatprep.mubr.bf16.mxu0 %v741
        %1087 = vmatmul.mubr.bf16.gmra.mrb[0].mxu0 %v505
        %v1088 = vpop.f32.mrb[0].mxu0
        %v1089 = vadd.f32 %v611, %v1088
        %v1090 = vpop.f32.mrb[0].mxu0
        %v1091 = vpop.f32.mrb[0].mxu0
        %v1092 = vadd.f32 %v611, %v1091
        %v1093 = vpop.f32.mrb[0].mxu0
        %1094 = vmatprep.mubr.bf16.mxu0 %v744
        %1095 = vmatmul.mubr.bf16.gmra.mrb[0].mxu0 %v507
        %v1096 = vpop.f32.mrb[0].mxu0
        %v1097 = vadd.f32 %v611, %v1096
        %v1098 = vpop.f32.mrb[0].mxu0
        %v1099 = vpop.f32.mrb[0].mxu0
        %v1100 = vadd.f32 %v611, %v1099
        %v1101 = vpop.f32.mrb[0].mxu0
        %1102 = vmatprep.mubr.bf16.mxu0 %v747
        %1103 = vmatmul.mubr.bf16.gmra.mrb[0].mxu0 %v509
        %v1104 = vpop.f32.mrb[0].mxu0
        %v1105 = vadd.f32 %v611, %v1104
        %v1106 = vpop.f32.mrb[0].mxu0
        %v1107 = vpop.f32.mrb[0].mxu0
        %v1108 = vadd.f32 %v611, %v1107
        %v1109 = vpop.f32.mrb[0].mxu0
        %1110 = vmatprep.mubr.bf16.mxu0 %v750
        %1111 = vmatmul.mubr.bf16.gmra.mrb[0].mxu0 %v511
        %v1112 = vpop.f32.mrb[0].mxu0
        %v1113 = vadd.f32 %v611, %v1112
        %v1114 = vpop.f32.mrb[0].mxu0
        %v1115 = vpop.f32.mrb[0].mxu0
        %v1116 = vadd.f32 %v611, %v1115
        %v1117 = vpop.f32.mrb[0].mxu0
        %1118 = vmatprep.mubr.bf16.mxu0 %v753
        %1119 = vmatmul.mubr.bf16.gmra.mrb[0].mxu0 %v513
        %v1120 = vpop.f32.mrb[0].mxu0
        %v1121 = vadd.f32 %v611, %v1120
        %v1122 = vpop.f32.mrb[0].mxu0
        %v1123 = vpop.f32.mrb[0].mxu0
        %v1124 = vadd.f32 %v611, %v1123
        %v1125 = vpop.f32.mrb[0].mxu0
        %1126 = vmatprep.mubr.bf16.mxu0 %v756
        %1127 = vmatmul.mubr.bf16.gmra.mrb[0].mxu0 %v515
        %v1128 = vpop.f32.mrb[0].mxu0
        %v1129 = vadd.f32 %v611, %v1128
        %v1130 = vpop.f32.mrb[0].mxu0
        %v1131 = vpop.f32.mrb[0].mxu0
        %v1132 = vadd.f32 %v611, %v1131
        %v1133 = vpop.f32.mrb[0].mxu0
        %1134 = vmatprep.mubr.bf16.mxu0 %v759
        %1135 = vmatmul.mubr.bf16.gmra.mrb[0].mxu0 %v517
        %v1136 = vpop.f32.mrb[0].mxu0
        %v1137 = vadd.f32 %v611, %v1136
        %v1138 = vpop.f32.mrb[0].mxu0
        %v1139 = vpop.f32.mrb[0].mxu0
        %v1140 = vadd.f32 %v611, %v1139
        %v1141 = vpop.f32.mrb[0].mxu0
        %1142 = vmatprep.mubr.bf16.mxu0 %v762
        %1143 = vmatmul.mubr.bf16.gmra.mrb[0].mxu0 %v519
        %v1144 = vpop.f32.mrb[0].mxu0
        %v1145 = vadd.f32 %v611, %v1144
        %v1146 = vpop.f32.mrb[0].mxu0
        %v1147 = vpop.f32.mrb[0].mxu0
        %v1148 = vadd.f32 %v611, %v1147
        %v1149 = vpop.f32.mrb[0].mxu0
        %1150 = vmatprep.mubr.bf16.mxu0 %v765
        %1151 = vmatmul.mubr.bf16.gmra.mrb[0].mxu0 %v521
        %v1152 = vpop.f32.mrb[0].mxu0
        %v1153 = vadd.f32 %v611, %v1152
        %v1154 = vpop.f32.mrb[0].mxu0
        %v1155 = vpop.f32.mrb[0].mxu0
        %v1156 = vadd.f32 %v611, %v1155
        %v1157 = vpop.f32.mrb[0].mxu0
        %1158 = vmatprep.mubr.bf16.mxu0 %v768
        %1159 = vmatmul.mubr.bf16.gmra.mrb[0].mxu0 %v523
        %v1160 = vpop.f32.mrb[0].mxu0
        %v1161 = vadd.f32 %v611, %v1160
        %v1162 = vpop.f32.mrb[0].mxu0
        %v1163 = vpop.f32.mrb[0].mxu0
        %v1164 = vadd.f32 %v611, %v1163
        %v1165 = vpop.f32.mrb[0].mxu0
        %1166 = vmatprep.mubr.bf16.mxu0 %v771
        %1167 = vmatmul.mubr.bf16.gmra.mrb[0].mxu0 %v525
        %v1168 = vpop.f32.mrb[0].mxu0
        %v1169 = vadd.f32 %v611, %v1168
        %v1170 = vpop.f32.mrb[0].mxu0
        %v1171 = vpop.f32.mrb[0].mxu0
        %v1172 = vadd.f32 %v611, %v1171
        %v1173 = vpop.f32.mrb[0].mxu0
        %1174 = vmatprep.mubr.bf16.mxu0 %v774
        %1175 = vmatmul.mubr.bf16.gmra.mrb[0].mxu0 %v527
        %v1176 = vpop.f32.mrb[0].mxu0
        %v1177 = vadd.f32 %v611, %v1176
        %v1178 = vpop.f32.mrb[0].mxu0
        %v1179 = vpop.f32.mrb[0].mxu0
        %v1180 = vadd.f32 %v611, %v1179
        %v1181 = vpop.f32.mrb[0].mxu0
        %1182 = vmatprep.mubr.bf16.mxu0 %v777
        %1183 = vmatmul.mubr.bf16.gmra.mrb[0].mxu0 %v529
        %v1184 = vpop.f32.mrb[0].mxu0
        %v1185 = vadd.f32 %v611, %v1184
        %v1186 = vpop.f32.mrb[0].mxu0
        %v1187 = vpop.f32.mrb[0].mxu0
        %v1188 = vadd.f32 %v611, %v1187
        %v1189 = vpop.f32.mrb[0].mxu0
        %1190 = vmatprep.mubr.bf16.mxu0 %v780
        %1191 = vmatmul.mubr.bf16.gmra.mrb[0].mxu0 %v531
        %v1192 = vpop.f32.mrb[0].mxu0
        %v1193 = vadd.f32 %v611, %v1192
        %v1194 = vpop.f32.mrb[0].mxu0
        %v1195 = vpop.f32.mrb[0].mxu0
        %v1196 = vadd.f32 %v611, %v1195
        %v1197 = vpop.f32.mrb[0].mxu0
        %1198 = vmatprep.mubr.bf16.mxu0 %v783
        %1199 = vmatmul.mubr.bf16.gmra.mrb[0].mxu0 %v533
        %v1200 = vpop.f32.mrb[0].mxu0
        %v1201 = vadd.f32 %v611, %v1200
        %v1202 = vpop.f32.mrb[0].mxu0
        %v1203 = vpop.f32.mrb[0].mxu0
        %v1204 = vadd.f32 %v611, %v1203
        %v1205 = vpop.f32.mrb[0].mxu0
        %1206 = vmatprep.mubr.bf16.mxu0 %v786
        %1207 = vmatmul.mubr.bf16.gmra.mrb[0].mxu0 %v535
        %v1208 = vpop.f32.mrb[0].mxu0
        %v1209 = vadd.f32 %v611, %v1208
        %v1210 = vpop.f32.mrb[0].mxu0
        %v1211 = vpop.f32.mrb[0].mxu0
        %v1212 = vadd.f32 %v611, %v1211
        %v1213 = vpop.f32.mrb[0].mxu0
        %1214 = vmatprep.mubr.bf16.mxu0 %v789
        %1215 = vmatmul.mubr.bf16.gmra.mrb[0].mxu0 %v537
        %v1216 = vpop.f32.mrb[0].mxu0
        %v1217 = vadd.f32 %v611, %v1216
        %v1218 = vpop.f32.mrb[0].mxu0
        %v1219 = vpop.f32.mrb[0].mxu0
        %v1220 = vadd.f32 %v611, %v1219
        %v1221 = vpop.f32.mrb[0].mxu0
        %1222 = vmatprep.mubr.bf16.mxu0 %v792
        %1223 = vmatmul.mubr.bf16.gmra.mrb[0].mxu0 %v539
        %v1224 = vpop.f32.mrb[0].mxu0
        %v1225 = vadd.f32 %v611, %v1224
        %v1226 = vpop.f32.mrb[0].mxu0
        %v1227 = vpop.f32.mrb[0].mxu0
        %v1228 = vadd.f32 %v611, %v1227
        %v1229 = vpop.f32.mrb[0].mxu0
        %1230 = vmatprep.mubr.bf16.mxu0 %v795
        %1231 = vmatmul.mubr.bf16.gmra.mrb[0].mxu0 %v541
        %v1232 = vpop.f32.mrb[0].mxu0
        %v1233 = vadd.f32 %v611, %v1232
        %v1234 = vpop.f32.mrb[0].mxu0
        %v1235 = vpop.f32.mrb[0].mxu0
        %v1236 = vadd.f32 %v611, %v1235
        %v1237 = vpop.f32.mrb[0].mxu0
        %1238 = vmatprep.mubr.bf16.mxu0 %v798
        %1239 = vmatmul.mubr.bf16.gmra.mrb[0].mxu0 %v543
        %v1240 = vpop.f32.mrb[0].mxu0
        %v1241 = vadd.f32 %v611, %v1240
        %v1242 = vpop.f32.mrb[0].mxu0
        %v1243 = vpop.f32.mrb[0].mxu0
        %v1244 = vadd.f32 %v611, %v1243
        %v1245 = vpop.f32.mrb[0].mxu0
        %1246 = vmatprep.mubr.bf16.mxu0 %v801
        %1247 = vmatmul.mubr.bf16.gmra.mrb[0].mxu0 %v545
        %v1248 = vpop.f32.mrb[0].mxu0
        %v1249 = vadd.f32 %v611, %v1248
        %v1250 = vpop.f32.mrb[0].mxu0
        %v1251 = vpop.f32.mrb[0].mxu0
        %v1252 = vadd.f32 %v611, %v1251
        %v1253 = vpop.f32.mrb[0].mxu0
        %1254 = vmatprep.mubr.bf16.mxu0 %v804
        %1255 = vmatmul.mubr.bf16.gmra.mrb[0].mxu0 %v547
        %v1256 = vpop.f32.mrb[0].mxu0
        %v1257 = vadd.f32 %v611, %v1256
        %v1258 = vpop.f32.mrb[0].mxu0
        %v1259 = vpop.f32.mrb[0].mxu0
        %v1260 = vadd.f32 %v611, %v1259
        %v1261 = vpop.f32.mrb[0].mxu0
        %1262 = vmatprep.mubr.bf16.mxu0 %v807
        %1263 = vmatmul.mubr.bf16.gmra.mrb[0].mxu0 %v549
        %v1264 = vpop.f32.mrb[0].mxu0
        %v1265 = vadd.f32 %v611, %v1264
        %v1266 = vpop.f32.mrb[0].mxu0
        %v1267 = vpop.f32.mrb[0].mxu0
        %v1268 = vadd.f32 %v611, %v1267
        %v1269 = vpop.f32.mrb[0].mxu0
        %1270 = vmatprep.mubr.bf16.mxu0 %v810
        %1271 = vmatmul.mubr.bf16.gmra.mrb[0].mxu0 %v551
        %v1272 = vpop.f32.mrb[0].mxu0
        %v1273 = vadd.f32 %v611, %v1272
        %v1274 = vpop.f32.mrb[0].mxu0
        %v1275 = vpop.f32.mrb[0].mxu0
        %v1276 = vadd.f32 %v611, %v1275
        %v1277 = vpop.f32.mrb[0].mxu0
        %1278 = vmatprep.mubr.bf16.mxu0 %v813
        %1279 = vmatmul.mubr.bf16.gmra.mrb[0].mxu0 %v553
        %v1280 = vpop.f32.mrb[0].mxu0
        %v1281 = vadd.f32 %v611, %v1280
        %v1282 = vpop.f32.mrb[0].mxu0
        %v1283 = vpop.f32.mrb[0].mxu0
        %v1284 = vadd.f32 %v611, %v1283
        %v1285 = vpop.f32.mrb[0].mxu0
        %1286 = vmatprep.mubr.bf16.mxu0 %v816
        %1287 = vmatmul.mubr.bf16.gmra.mrb[0].mxu0 %v555
        %v1288 = vpop.f32.mrb[0].mxu0
        %v1289 = vadd.f32 %v611, %v1288
        %v1290 = vpop.f32.mrb[0].mxu0
        %v1291 = vpop.f32.mrb[0].mxu0
        %v1292 = vadd.f32 %v611, %v1291
        %v1293 = vpop.f32.mrb[0].mxu0
        %1294 = vmatprep.mubr.bf16.mxu0 %v819
        %1295 = vmatmul.mubr.bf16.gmra.mrb[0].mxu0 %v557
        %v1296 = vpop.f32.mrb[0].mxu0
        %v1297 = vadd.f32 %v611, %v1296
        %v1298 = vpop.f32.mrb[0].mxu0
        %v1299 = vpop.f32.mrb[0].mxu0
        %v1300 = vadd.f32 %v611, %v1299
        %v1301 = vpop.f32.mrb[0].mxu0
        %1302 = vmatprep.mubr.bf16.mxu0 %v822
        %1303 = vmatmul.mubr.bf16.gmra.mrb[0].mxu0 %v559
        %v1304 = vpop.f32.mrb[0].mxu0
        %v1305 = vadd.f32 %v611, %v1304
        %v1306 = vpop.f32.mrb[0].mxu0
        %v1307 = vpop.f32.mrb[0].mxu0
        %v1308 = vadd.f32 %v611, %v1307
        %v1309 = vpop.f32.mrb[0].mxu0
        %1310 = vmatprep.mubr.bf16.mxu0 %v825
        %1311 = vmatmul.mubr.bf16.gmra.mrb[0].mxu0 %v561
        %v1312 = vpop.f32.mrb[0].mxu0
        %v1313 = vadd.f32 %v611, %v1312
        %v1314 = vpop.f32.mrb[0].mxu0
        %v1315 = vpop.f32.mrb[0].mxu0
        %v1316 = vadd.f32 %v611, %v1315
        %v1317 = vpop.f32.mrb[0].mxu0
        %1318 = vmatprep.mubr.bf16.mxu0 %v828
        %1319 = vmatmul.mubr.bf16.gmra.mrb[0].mxu0 %v563
        %v1320 = vpop.f32.mrb[0].mxu0
        %v1321 = vadd.f32 %v611, %v1320
        %v1322 = vpop.f32.mrb[0].mxu0
        %v1323 = vpop.f32.mrb[0].mxu0
        %v1324 = vadd.f32 %v611, %v1323
        %v1325 = vpop.f32.mrb[0].mxu0
        %1326 = vmatprep.mubr.bf16.mxu0 %v831
        %1327 = vmatmul.mubr.bf16.gmra.mrb[0].mxu0 %v565
        %v1328 = vpop.f32.mrb[0].mxu0
        %v1329 = vadd.f32 %v611, %v1328
        %v1330 = vpop.f32.mrb[0].mxu0
        %v1331 = vpop.f32.mrb[0].mxu0
        %v1332 = vadd.f32 %v611, %v1331
        %v1333 = vpop.f32.mrb[0].mxu0
        %1334 = vmatprep.mubr.bf16.mxu0 %v834
        %1335 = vmatmul.mubr.bf16.gmra.mrb[0].mxu0 %v567
        %v1336 = vpop.f32.mrb[0].mxu0
        %v1337 = vadd.f32 %v611, %v1336
        %v1338 = vpop.f32.mrb[0].mxu0
        %v1339 = vpop.f32.mrb[0].mxu0
        %v1340 = vadd.f32 %v611, %v1339
        %v1341 = vpop.f32.mrb[0].mxu0
        %1342 = vmatprep.mubr.bf16.mxu0 %v837
        %1343 = vmatmul.mubr.bf16.gmra.mrb[0].mxu0 %v569
        %v1344 = vpop.f32.mrb[0].mxu0
        %v1345 = vadd.f32 %v611, %v1344
        %v1346 = vpop.f32.mrb[0].mxu0
        %v1347 = vpop.f32.mrb[0].mxu0
        %v1348 = vadd.f32 %v611, %v1347
        %v1349 = vpop.f32.mrb[0].mxu0
        %1350 = vmatprep.mubr.bf16.mxu0 %v840
        %1351 = vmatmul.mubr.bf16.gmra.mrb[0].mxu0 %v571
        %v1352 = vpop.f32.mrb[0].mxu0
        %v1353 = vadd.f32 %v611, %v1352
        %v1354 = vpop.f32.mrb[0].mxu0
        %v1355 = vpop.f32.mrb[0].mxu0
        %v1356 = vadd.f32 %v611, %v1355
        %v1357 = vpop.f32.mrb[0].mxu0
        %1358 = vmatprep.mubr.bf16.mxu0 %v843
        %1359 = vmatmul.mubr.bf16.gmra.mrb[0].mxu0 %v573
        %v1360 = vpop.f32.mrb[0].mxu0
        %v1361 = vadd.f32 %v611, %v1360
        %v1362 = vpop.f32.mrb[0].mxu0
        %v1363 = vpop.f32.mrb[0].mxu0
        %v1364 = vadd.f32 %v611, %v1363
        %v1365 = vpop.f32.mrb[0].mxu0
        %1366 = vmatprep.mubr.bf16.mxu0 %v846
        %1367 = vmatmul.mubr.bf16.gmra.mrb[0].mxu0 %v575
        %v1368 = vpop.f32.mrb[0].mxu0
        %v1369 = vadd.f32 %v611, %v1368
        %v1370 = vpop.f32.mrb[0].mxu0
        %v1371 = vpop.f32.mrb[0].mxu0
        %v1372 = vadd.f32 %v611, %v1371
        %v1373 = vpop.f32.mrb[0].mxu0
        %1374 = vmatprep.mubr.bf16.mxu0 %v849
        %1375 = vmatmul.mubr.bf16.gmra.mrb[0].mxu0 %v577
        %v1376 = vpop.f32.mrb[0].mxu0
        %v1377 = vadd.f32 %v611, %v1376
        %v1378 = vpop.f32.mrb[0].mxu0
        %v1379 = vpop.f32.mrb[0].mxu0
        %v1380 = vadd.f32 %v611, %v1379
        %v1381 = vpop.f32.mrb[0].mxu0
        %1382 = vmatprep.mubr.bf16.mxu0 %v852
        %1383 = vmatmul.mubr.bf16.gmra.mrb[0].mxu0 %v579
        %v1384 = vpop.f32.mrb[0].mxu0
        %v1385 = vadd.f32 %v611, %v1384
        %v1386 = vpop.f32.mrb[0].mxu0
        %v1387 = vpop.f32.mrb[0].mxu0
        %v1388 = vadd.f32 %v611, %v1387
        %v1389 = vpop.f32.mrb[0].mxu0
        %1390 = vmatprep.mubr.bf16.mxu0 %v855
        %1391 = vmatmul.mubr.bf16.gmra.mrb[0].mxu0 %v581
        %v1392 = vpop.f32.mrb[0].mxu0
        %v1393 = vadd.f32 %v611, %v1392
        %v1394 = vpop.f32.mrb[0].mxu0
        %v1395 = vpop.f32.mrb[0].mxu0
        %v1396 = vadd.f32 %v611, %v1395
        %v1397 = vpop.f32.mrb[0].mxu0
        %1398 = vmatprep.mubr.bf16.mxu0 %v858
        %1399 = vmatmul.mubr.bf16.gmra.mrb[0].mxu0 %v583
        %v1400 = vpop.f32.mrb[0].mxu0
        %v1401 = vadd.f32 %v611, %v1400
        %v1402 = vpop.f32.mrb[0].mxu0
        %v1403 = vpop.f32.mrb[0].mxu0
        %v1404 = vadd.f32 %v611, %v1403
        %v1405 = vpop.f32.mrb[0].mxu0
        %1406 = vmatprep.mubr.bf16.mxu0 %v861
        %1407 = vmatmul.mubr.bf16.gmra.mrb[0].mxu0 %v585
        %v1408 = vpop.f32.mrb[0].mxu0
        %v1409 = vadd.f32 %v611, %v1408
        %v1410 = vpop.f32.mrb[0].mxu0
        %v1411 = vpop.f32.mrb[0].mxu0
        %v1412 = vadd.f32 %v611, %v1411
        %v1413 = vpop.f32.mrb[0].mxu0
        %1414 = vdwg.mxu0
        %vm1415 = vcmask 261120
        %1416 = vst.msk [vmem:[%s201] sm:$0xff] %vm1415, %v905
        %1417 = vst.msk [vmem:[%s201 + $0x8] sm:$0xff] %vm1415, %v908
        %1418 = vst.msk [vmem:[%s201 + $0x10] sm:$0xff] %vm1415, %v913
        %1419 = vst.msk [vmem:[%s201 + $0x18] sm:$0xff] %vm1415, %v916
        %1420 = vst.msk [vmem:[%s201 + $0x20] sm:$0xff] %vm1415, %v921
        %1421 = vst.msk [vmem:[%s201 + $0x28] sm:$0xff] %vm1415, %v924
        %1422 = vst.msk [vmem:[%s201 + $0x30] sm:$0xff] %vm1415, %v929
        %1423 = vst.msk [vmem:[%s201 + $0x38] sm:$0xff] %vm1415, %v932
        %1424 = vst.msk [vmem:[%s201 + $0x40] sm:$0xff] %vm1415, %v937
        %1425 = vst.msk [vmem:[%s201 + $0x48] sm:$0xff] %vm1415, %v940
        %1426 = vst.msk [vmem:[%s201 + $0x50] sm:$0xff] %vm1415, %v945
        %1427 = vst.msk [vmem:[%s201 + $0x58] sm:$0xff] %vm1415, %v948
        %1428 = vst.msk [vmem:[%s201 + $0x60] sm:$0xff] %vm1415, %v953
        %1429 = vst.msk [vmem:[%s201 + $0x68] sm:$0xff] %vm1415, %v956
        %1430 = vst.msk [vmem:[%s201 + $0x70] sm:$0xff] %vm1415, %v961
        %1431 = vst.msk [vmem:[%s201 + $0x78] sm:$0xff] %vm1415, %v964
        %1432 = vst.msk [vmem:[%s201 + $0x80] sm:$0xff] %vm1415, %v969
        %1433 = vst.msk [vmem:[%s201 + $0x88] sm:$0xff] %vm1415, %v972
        %1434 = vst.msk [vmem:[%s201 + $0x90] sm:$0xff] %vm1415, %v977
        %1435 = vst.msk [vmem:[%s201 + $0x98] sm:$0xff] %vm1415, %v980
        %1436 = vst.msk [vmem:[%s201 + $0xa0] sm:$0xff] %vm1415, %v985
        %1437 = vst.msk [vmem:[%s201 + $0xa8] sm:$0xff] %vm1415, %v988
        %1438 = vst.msk [vmem:[%s201 + $0xb0] sm:$0xff] %vm1415, %v993
        %1439 = vst.msk [vmem:[%s201 + $0xb8] sm:$0xff] %vm1415, %v996
        %1440 = vst.msk [vmem:[%s201 + $0xc0] sm:$0xff] %vm1415, %v1001
        %1441 = vst.msk [vmem:[%s201 + $0xc8] sm:$0xff] %vm1415, %v1004
        %1442 = vst.msk [vmem:[%s201 + $0xd0] sm:$0xff] %vm1415, %v1009
        %1443 = vst.msk [vmem:[%s201 + $0xd8] sm:$0xff] %vm1415, %v1012
        %1444 = vst.msk [vmem:[%s201 + $0xe0] sm:$0xff] %vm1415, %v1017
        %1445 = vst.msk [vmem:[%s201 + $0xe8] sm:$0xff] %vm1415, %v1020
        %1446 = vst.msk [vmem:[%s201 + $0xf0] sm:$0xff] %vm1415, %v1025
        %1447 = vst.msk [vmem:[%s201 + $0xf8] sm:$0xff] %vm1415, %v1028
        %1448 = vst.msk [vmem:[%s201 + $0x100] sm:$0xff] %vm1415, %v1033
        %1449 = vst.msk [vmem:[%s201 + $0x108] sm:$0xff] %vm1415, %v1036
        %1450 = vst.msk [vmem:[%s201 + $0x110] sm:$0xff] %vm1415, %v1041
        %1451 = vst.msk [vmem:[%s201 + $0x118] sm:$0xff] %vm1415, %v1044
        %1452 = vst.msk [vmem:[%s201 + $0x120] sm:$0xff] %vm1415, %v1049
        %1453 = vst.msk [vmem:[%s201 + $0x128] sm:$0xff] %vm1415, %v1052
        %1454 = vst.msk [vmem:[%s201 + $0x130] sm:$0xff] %vm1415, %v1057
        %1455 = vst.msk [vmem:[%s201 + $0x138] sm:$0xff] %vm1415, %v1060
        %1456 = vst.msk [vmem:[%s201 + $0x140] sm:$0xff] %vm1415, %v1065
        %1457 = vst.msk [vmem:[%s201 + $0x148] sm:$0xff] %vm1415, %v1068
        %1458 = vst.msk [vmem:[%s201 + $0x150] sm:$0xff] %vm1415, %v1073
        %1459 = vst.msk [vmem:[%s201 + $0x158] sm:$0xff] %vm1415, %v1076
        %1460 = vst.msk [vmem:[%s201 + $0x160] sm:$0xff] %vm1415, %v1081
        %1461 = vst.msk [vmem:[%s201 + $0x168] sm:$0xff] %vm1415, %v1084
        %1462 = vst.msk [vmem:[%s201 + $0x170] sm:$0xff] %vm1415, %v1089
        %1463 = vst.msk [vmem:[%s201 + $0x178] sm:$0xff] %vm1415, %v1092
        %1464 = vst.msk [vmem:[%s201 + $0x180] sm:$0xff] %vm1415, %v1097
        %1465 = vst.msk [vmem:[%s201 + $0x188] sm:$0xff] %vm1415, %v1100
        %1466 = vst.msk [vmem:[%s201 + $0x190] sm:$0xff] %vm1415, %v1105
        %1467 = vst.msk [vmem:[%s201 + $0x198] sm:$0xff] %vm1415, %v1108
        %1468 = vst.msk [vmem:[%s201 + $0x1a0] sm:$0xff] %vm1415, %v1113
        %1469 = vst.msk [vmem:[%s201 + $0x1a8] sm:$0xff] %vm1415, %v1116
        %1470 = vst.msk [vmem:[%s201 + $0x1b0] sm:$0xff] %vm1415, %v1121
        %1471 = vst.msk [vmem:[%s201 + $0x1b8] sm:$0xff] %vm1415, %v1124
        %1472 = vst.msk [vmem:[%s201 + $0x1c0] sm:$0xff] %vm1415, %v1129
        %1473 = vst.msk [vmem:[%s201 + $0x1c8] sm:$0xff] %vm1415, %v1132
        %1474 = vst.msk [vmem:[%s201 + $0x1d0] sm:$0xff] %vm1415, %v1137
        %1475 = vst.msk [vmem:[%s201 + $0x1d8] sm:$0xff] %vm1415, %v1140
        %1476 = vst.msk [vmem:[%s201 + $0x1e0] sm:$0xff] %vm1415, %v1145
        %1477 = vst.msk [vmem:[%s201 + $0x1e8] sm:$0xff] %vm1415, %v1148
        %1478 = vst.msk [vmem:[%s201 + $0x1f0] sm:$0xff] %vm1415, %v1153
        %1479 = vst.msk [vmem:[%s201 + $0x1f8] sm:$0xff] %vm1415, %v1156
        %1480 = vst.msk [vmem:[%s201 + $0x200] sm:$0xff] %vm1415, %v1161
        %1481 = vst.msk [vmem:[%s201 + $0x208] sm:$0xff] %vm1415, %v1164
        %1482 = vst.msk [vmem:[%s201 + $0x210] sm:$0xff] %vm1415, %v1169
        %1483 = vst.msk [vmem:[%s201 + $0x218] sm:$0xff] %vm1415, %v1172
        %1484 = vst.msk [vmem:[%s201 + $0x220] sm:$0xff] %vm1415, %v1177
        %1485 = vst.msk [vmem:[%s201 + $0x228] sm:$0xff] %vm1415, %v1180
        %1486 = vst.msk [vmem:[%s201 + $0x230] sm:$0xff] %vm1415, %v1185
        %1487 = vst.msk [vmem:[%s201 + $0x238] sm:$0xff] %vm1415, %v1188
        %1488 = vst.msk [vmem:[%s201 + $0x240] sm:$0xff] %vm1415, %v1193
        %1489 = vst.msk [vmem:[%s201 + $0x248] sm:$0xff] %vm1415, %v1196
        %1490 = vst.msk [vmem:[%s201 + $0x250] sm:$0xff] %vm1415, %v1201
        %1491 = vst.msk [vmem:[%s201 + $0x258] sm:$0xff] %vm1415, %v1204
        %1492 = vst.msk [vmem:[%s201 + $0x260] sm:$0xff] %vm1415, %v1209
        %1493 = vst.msk [vmem:[%s201 + $0x268] sm:$0xff] %vm1415, %v1212
        %1494 = vst.msk [vmem:[%s201 + $0x270] sm:$0xff] %vm1415, %v1217
        %1495 = vst.msk [vmem:[%s201 + $0x278] sm:$0xff] %vm1415, %v1220
        %1496 = vst.msk [vmem:[%s201 + $0x280] sm:$0xff] %vm1415, %v1225
        %1497 = vst.msk [vmem:[%s201 + $0x288] sm:$0xff] %vm1415, %v1228
        %1498 = vst.msk [vmem:[%s201 + $0x290] sm:$0xff] %vm1415, %v1233
        %1499 = vst.msk [vmem:[%s201 + $0x298] sm:$0xff] %vm1415, %v1236
        %1500 = vst.msk [vmem:[%s201 + $0x2a0] sm:$0xff] %vm1415, %v1241
        %1501 = vst.msk [vmem:[%s201 + $0x2a8] sm:$0xff] %vm1415, %v1244
        %1502 = vst.msk [vmem:[%s201 + $0x2b0] sm:$0xff] %vm1415, %v1249
        %1503 = vst.msk [vmem:[%s201 + $0x2b8] sm:$0xff] %vm1415, %v1252
        %1504 = vst.msk [vmem:[%s201 + $0x2c0] sm:$0xff] %vm1415, %v1257
        %1505 = vst.msk [vmem:[%s201 + $0x2c8] sm:$0xff] %vm1415, %v1260
        %1506 = vst.msk [vmem:[%s201 + $0x2d0] sm:$0xff] %vm1415, %v1265
        %1507 = vst.msk [vmem:[%s201 + $0x2d8] sm:$0xff] %vm1415, %v1268
        %1508 = vst.msk [vmem:[%s201 + $0x2e0] sm:$0xff] %vm1415, %v1273
        %1509 = vst.msk [vmem:[%s201 + $0x2e8] sm:$0xff] %vm1415, %v1276
        %1510 = vst.msk [vmem:[%s201 + $0x2f0] sm:$0xff] %vm1415, %v1281
        %1511 = vst.msk [vmem:[%s201 + $0x2f8] sm:$0xff] %vm1415, %v1284
        %1512 = vst.msk [vmem:[%s201 + $0x300] sm:$0xff] %vm1415, %v1289
        %1513 = vst.msk [vmem:[%s201 + $0x308] sm:$0xff] %vm1415, %v1292
        %1514 = vst.msk [vmem:[%s201 + $0x310] sm:$0xff] %vm1415, %v1297
        %1515 = vst.msk [vmem:[%s201 + $0x318] sm:$0xff] %vm1415, %v1300
        %1516 = vst.msk [vmem:[%s201 + $0x320] sm:$0xff] %vm1415, %v1305
        %1517 = vst.msk [vmem:[%s201 + $0x328] sm:$0xff] %vm1415, %v1308
        %1518 = vst.msk [vmem:[%s201 + $0x330] sm:$0xff] %vm1415, %v1313
        %1519 = vst.msk [vmem:[%s201 + $0x338] sm:$0xff] %vm1415, %v1316
        %1520 = vst.msk [vmem:[%s201 + $0x340] sm:$0xff] %vm1415, %v1321
        %1521 = vst.msk [vmem:[%s201 + $0x348] sm:$0xff] %vm1415, %v1324
        %1522 = vst.msk [vmem:[%s201 + $0x350] sm:$0xff] %vm1415, %v1329
        %1523 = vst.msk [vmem:[%s201 + $0x358] sm:$0xff] %vm1415, %v1332
        %1524 = vst.msk [vmem:[%s201 + $0x360] sm:$0xff] %vm1415, %v1337
        %1525 = vst.msk [vmem:[%s201 + $0x368] sm:$0xff] %vm1415, %v1340
        %1526 = vst.msk [vmem:[%s201 + $0x370] sm:$0xff] %vm1415, %v1345
        %1527 = vst.msk [vmem:[%s201 + $0x378] sm:$0xff] %vm1415, %v1348
        %1528 = vst.msk [vmem:[%s201 + $0x380] sm:$0xff] %vm1415, %v1353
        %1529 = vst.msk [vmem:[%s201 + $0x388] sm:$0xff] %vm1415, %v1356
        %1530 = vst.msk [vmem:[%s201 + $0x390] sm:$0xff] %vm1415, %v1361
        %1531 = vst.msk [vmem:[%s201 + $0x398] sm:$0xff] %vm1415, %v1364
        %1532 = vst.msk [vmem:[%s201 + $0x3a0] sm:$0xff] %vm1415, %v1369
        %1533 = vst.msk [vmem:[%s201 + $0x3a8] sm:$0xff] %vm1415, %v1372
        %1534 = vst.msk [vmem:[%s201 + $0x3b0] sm:$0xff] %vm1415, %v1377
        %1535 = vst.msk [vmem:[%s201 + $0x3b8] sm:$0xff] %vm1415, %v1380
        %1536 = vst.msk [vmem:[%s201 + $0x3c0] sm:$0xff] %vm1415, %v1385
        %1537 = vst.msk [vmem:[%s201 + $0x3c8] sm:$0xff] %vm1415, %v1388
        %1538 = vst.msk [vmem:[%s201 + $0x3d0] sm:$0xff] %vm1415, %v1393
        %1539 = vst.msk [vmem:[%s201 + $0x3d8] sm:$0xff] %vm1415, %v1396
        %1540 = vst.msk [vmem:[%s201 + $0x3e0] sm:$0xff] %vm1415, %v1401
        %1541 = vst.msk [vmem:[%s201 + $0x3e8] sm:$0xff] %vm1415, %v1404
        %1542 = vst.msk [vmem:[%s201 + $0x3f0] sm:$0xff] %vm1415, %v1409
        %1543 = vst.msk [vmem:[%s201 + $0x3f8] sm:$0xff] %vm1415, %v1412
        %s1544 = sand.u32 %s97, 1
        %s1545 = scalar_lea.sflag [#allocation4], %s1544
        %s1546 = sand.u32 %s97, 1
        %s1547 = smul.addr %s1546, 1024
        %s1548 = scalar_lea.vmem [#allocation7], %s1547
        // Predicated region
        $region41: #{tpu_custom_call.1} parent=31 // pred_check
          %p1549 = pneg %p107
        $region42: #{tpu_custom_call.1} parent=31 // pred_check_branch
          %1551 = sbr.rel (%p1549) target = $region44
        $region43: #{tpu_custom_call.1} parent=31 // pred_region
          %s1553 = ssub.s32 16384, 16384
          %1554 = vsyncadd %s1545, %s1553
          %s1555 = smul.addr %s21, 128
          %s1556 = smul.addr %s1555, 128
          %s1557 = scalar_lea.hbm %s3, %s1556
          %s1558 = sshll.u32 %s1548, 4
          %s1559 = int_to_ptr.vmem [resolvable:$true] %s1558
          %1564 = dma.vmem_to_hbm [thread:$0]  %s1559, 16384, %s1557, %s1545, 128, 128, 8
        $region44: #{tpu_custom_call.1} parent=31 // pred_fallthru
          _
      $region32: #{tpu_custom_call.1} parent=5 // pred_fallthru
        _
      %p1565 = scmp.le.s32.totalorder 2, %s16
      // Predicated region
      $region45: #{tpu_custom_call.1} parent=5 // pred_check
        %p1566 = pneg %p1565
      $region46: #{tpu_custom_call.1} parent=5 // pred_check_branch
        %1568 = sbr.rel (%p1566) target = $region48
      $region47: #{tpu_custom_call.1} parent=5 // pred_region
        %s1569 = ssub.s32 %s16, 2
        // Predicated region
        $region49: #{tpu_custom_call.1} parent=47 // pred_check
          %p1570 = pneg %p113
        $region50: #{tpu_custom_call.1} parent=47 // pred_check_branch
          %1572 = sbr.rel (%p1570) target = $region52
        $region51: #{tpu_custom_call.1} parent=47 // pred_region
          %s1573 = sand.u32 %s98, 1
          %s1574 = scalar_lea.sflag [#allocation4], %s1573
          %s1575 = sand.u32 %s98, 1
          %s1576 = smul.addr %s1575, 1024
          %s1577 = scalar_lea.vmem [#allocation7], %s1576
          %1578 = dma.done %s1574, 16384
        $region52: #{tpu_custom_call.1} parent=47 // pred_fallthru
          _
      $region48: #{tpu_custom_call.1} parent=5 // pred_fallthru
        _
    $region6: #{tpu_custom_call.1} parent=1 // loop_footer
      %s20 = sadd.s32 1, %s16
    $region7: #{tpu_custom_call.1} parent=1 // loop_footer_branch
      %15 = sbr.rel target = $region3
    $region8: #{tpu_custom_call.1} parent=1 // loop_exit
      _
    %1579 = vsyncpa [#allocation3], 1
    %s1580 = scalar_lea.sflag [#allocation3], 1
    %1581 = vsyncpa %s1580, 1
    %1582 = vsyncpa [#allocation6], 1
    %1583 = vsyncpa [#allocation4], 1
    %s1584 = scalar_lea.sflag [#allocation4], 1
    %1585 = vsyncpa %s1584, 1

</llo_original>
